<compile_context>
chip_gen: v7x
topology: tpu7x:2x2x1
jax: 0.10.0
libtpu: 0.0.40
codegen_flags: <defaults>
</compile_context>

<pallas_src>
import jax
import jax.numpy as jnp
from jax.experimental import pallas as pl
from jax.experimental.pallas import tpu as pltpu

LANES = 128          # lane width; all features are zero-padded to 128 in-kernel
GAT_SLOPE = 0.2      # GATv2Conv default LeakyReLU negative_slope
NEG_BIG = -1e30      # logit for masked (non-existent) edges


def _gatv2(src, dst, mask, w_src, b_src, w_dst, b_dst, attn):
    """Single-head GATv2Conv over a dense relation mask.

    src  : [Ns, F]  source-node features        w_src/w_dst : [F, F] (stored [in, out])
    dst  : [Nd, F]  destination-node features   b_src/b_dst : [1, F]
    mask : [Nd, Ns] 1.0 where edge src->dst     attn        : [1, F]
    returns [Nd, F]
    """
    el = jnp.dot(src, w_src, preferred_element_type=jnp.float32) + b_src
    er = jnp.dot(dst, w_dst, preferred_element_type=jnp.float32) + b_dst
    e = el[None, :, :] + er[:, None, :]                      # [Nd, Ns, F]
    e = jnp.where(e >= 0.0, e, GAT_SLOPE * e)                # LeakyReLU(0.2)
    scores = jnp.sum(e * attn[None, :, :], axis=-1)          # [Nd, Ns]
    scores = jnp.where(mask > 0.5, scores, NEG_BIG)
    scores = scores - jnp.max(scores, axis=-1, keepdims=True)
    p = jnp.exp(scores)
    alpha = p / jnp.sum(p, axis=-1, keepdims=True)           # edge softmax per dst node
    return jnp.dot(alpha, el, preferred_element_type=jnp.float32)


def spatial_gat_kernel(u_ref, i_ref, mrate_ref, mrated_ref, mlink_ref,
                       w_ref, r_ref, out_ref):
    U = u_ref[...]              # [Nu, LANES]  user embeddings (lane-padded)
    I = i_ref[...]              # [Ni, LANES]  item embeddings (lane-padded)
    R = r_ref[...]              # [13, LANES]  packed bias / attention rows
    m_rate = mrate_ref[...]     # [Ni, Nu]  user -> item edges
    m_rated = mrated_ref[...]   # [Nu, Ni]  item -> user edges
    m_link = mlink_ref[...]     # [Nu, Nu]  user -> user edges

    def conv(src, dst, mask, wi, ri):
        return _gatv2(src, dst, mask,
                      w_ref[wi], R[ri:ri + 1, :],
                      w_ref[wi + 1], R[ri + 1:ri + 2, :],
                      R[ri + 2:ri + 3, :])

    # ---- layer 1 ----
    h1_item = conv(U, I, m_rate, 0, 0)            # 'rate'  user -> item
    h2_user = conv(I, U, m_rated, 2, 3)           # 'rated' item -> user
    # ---- layer 2 (dst features are the raw user embeddings) ----
    item_inf = conv(h1_item, U, m_rated, 4, 6)    # 'rated' item -> user
    social = conv(h2_user, U, m_link, 6, 9)       # 'link'  user -> user
    # ---- output Linear on concat([item_inf, social]) expressed as a split matmul ----
    out = (jnp.dot(item_inf, w_ref[8], preferred_element_type=jnp.float32)
           + jnp.dot(social, w_ref[9], preferred_element_type=jnp.float32)
           + R[12:13, :])
    out_ref[...] = out.astype(out_ref.dtype)


def _full_spec(a):
    nd = a.ndim
    return pl.BlockSpec(a.shape, lambda i, _nd=nd: (0,) * _nd)


def spatial_attention_gat_pallas(user_embed, item_embed, m_rate, m_rated, m_link,
                                 w_slab, r_slab):
    n_user, emb = user_embed.shape
    n_item = item_embed.shape[0]
    # Zero-pad features to 128 lanes so all in-kernel compute & stores are lane-dense.
    u_pad = jnp.zeros((n_user, LANES), jnp.float32).at[:, :emb].set(user_embed)
    i_pad = jnp.zeros((n_item, LANES), jnp.float32).at[:, :emb].set(item_embed)

    operands = (u_pad, i_pad,
                m_rate.astype(jnp.float32), m_rated.astype(jnp.float32),
                m_link.astype(jnp.float32), w_slab, r_slab)
    out_pad = pl.pallas_call(
        spatial_gat_kernel,
        out_shape=jax.ShapeDtypeStruct((n_user, LANES), jnp.float32),
        grid=(1,),
        in_specs=[_full_spec(a) for a in operands],
        out_specs=pl.BlockSpec((n_user, LANES), lambda i: (0, 0)),
        compiler_params=pltpu.CompilerParams(dimension_semantics=("arbitrary",)),
    )(*operands)
    return out_pad[:, :emb]     # drop the lane padding


# ----------------------------- parameters & packing -----------------------------

def make_params(key, emb):
    """Deterministic parameters mirroring the module's layer shapes."""
    def linear(k, fan_in, fan_out):
        k1, k2 = jax.random.split(k)
        bound = fan_in ** -0.5
        w = jax.random.uniform(k1, (fan_in, fan_out), jnp.float32, -bound, bound)
        b = jax.random.uniform(k2, (fan_out,), jnp.float32, -bound, bound)
        return w, b

    def gatv2(k):
        k1, k2, k3 = jax.random.split(k, 3)
        w_src, b_src = linear(k1, emb, emb)
        w_dst, b_dst = linear(k2, emb, emb)
        attn = jax.random.normal(k3, (emb,), jnp.float32) * (2.0 / emb) ** 0.5
        return dict(w_src=w_src, b_src=b_src, w_dst=w_dst, b_dst=b_dst, attn=attn)

    ks = jax.random.split(key, 5)
    w_out, b_out = linear(ks[4], 2 * emb, emb)
    return dict(c_rate1=gatv2(ks[0]), c_rated1=gatv2(ks[1]),
                c_rated2=gatv2(ks[2]), c_link2=gatv2(ks[3]),
                w_out=w_out, b_out=b_out)


def pack_params(params, emb):
    """Pack everything into one weight slab [10, L, L] and one row slab [13, L]."""
    def pad_mat(w):
        return jnp.zeros((LANES, LANES), jnp.float32).at[:w.shape[0], :w.shape[1]].set(w)

    def pad_row(v):
        return jnp.zeros((LANES,), jnp.float32).at[:v.shape[0]].set(v)

    mats, rows = [], []
    for name in ("c_rate1", "c_rated1", "c_rated2", "c_link2"):
        c = params[name]
        mats += [pad_mat(c["w_src"]), pad_mat(c["w_dst"])]
        rows += [pad_row(c["b_src"]), pad_row(c["b_dst"]), pad_row(c["attn"])]
    mats += [pad_mat(params["w_out"][:emb, :]), pad_mat(params["w_out"][emb:, :])]
    rows += [pad_row(params["b_out"])]
    return jnp.stack(mats), jnp.stack(rows)


def make_graph_masks(key, n_user, n_item):
    """Dense 0/1 adjacency masks mask[dst, src] for the 'rate'/'rated'/'link' relations."""
    k1, k2 = jax.random.split(key)
    rate = (jax.random.uniform(k1, (n_item, n_user)) < 0.4).astype(jnp.float32)
    # Every destination node needs in-degree >= 1 (DGL GATv2Conv would raise otherwise).
    rate = rate.at[jnp.arange(n_item), jnp.arange(n_item) % n_user].set(1.0)  # each item rated
    rate = rate.at[jnp.arange(n_user) % n_item, jnp.arange(n_user)].set(1.0)  # each user rates
    rated = rate.T                                  # 'rated' edges are the reverse of 'rate'
    link = (jax.random.uniform(k2, (n_user, n_user)) < 0.35).astype(jnp.float32)
    link = link.at[jnp.arange(n_user), (jnp.arange(n_user) + 1) % n_user].set(1.0)
    return rate, rated, link


# ----------------------------- pure-JAX reference -----------------------------

def spatial_attention_gat_reference(user_embed, item_embed, m_rate, m_rated, m_link, params):
    def conv(src, dst, mask, c):
        return _gatv2(src, dst, mask,
                      c["w_src"], c["b_src"][None, :],
                      c["w_dst"], c["b_dst"][None, :],
                      c["attn"][None, :])

    h1_item = conv(user_embed, item_embed, m_rate, params["c_rate1"])
    h2_user = conv(item_embed, user_embed, m_rated, params["c_rated1"])
    item_inf = conv(h1_item, user_embed, m_rated, params["c_rated2"])
    social = conv(h2_user, user_embed, m_link, params["c_link2"])
    cat = jnp.concatenate([item_inf, social], axis=1)
    return cat @ params["w_out"] + params["b_out"][None, :]


if __name__ == "__main__":
    EMB = 4        # embedding_size
    N_USER = 8
    N_ITEM = 16

    key = jax.random.PRNGKey(0)
    k_u, k_i, k_g, k_p = jax.random.split(key, 4)

    user_embed = jax.random.normal(k_u, (N_USER, EMB), jnp.float32)
    item_embed = jax.random.normal(k_i, (N_ITEM, EMB), jnp.float32)
    m_rate, m_rated, m_link = make_graph_masks(k_g, N_USER, N_ITEM)

    params = make_params(k_p, EMB)
    w_slab, r_slab = pack_params(params, EMB)

    out = spatial_attention_gat_pallas(user_embed, item_embed,
                                       m_rate, m_rated, m_link, w_slab, r_slab)
    jax.block_until_ready(out)

    ref = spatial_attention_gat_reference(user_embed, item_embed,
                                          m_rate, m_rated, m_link, params)
    assert out.shape == (N_USER, EMB)
    assert jnp.allclose(out, ref, atol=1e-4, rtol=1e-4), float(jnp.max(jnp.abs(out - ref)))
    print("KERNEL_OK")
</pallas_src>

<mosaic_0001>
module attributes {stable_mosaic.version = 11 : i64} {
  func.func @spatial_gat_kernel(%arg0: i32, %arg1: memref<8x128xf32, #tpu.memory_space<vmem>>, %arg2: memref<16x128xf32, #tpu.memory_space<vmem>>, %arg3: memref<16x8xf32, #tpu.memory_space<vmem>>, %arg4: memref<8x16xf32, #tpu.memory_space<vmem>>, %arg5: memref<8x8xf32, #tpu.memory_space<vmem>>, %arg6: memref<10x128x128xf32, #tpu.memory_space<vmem>>, %arg7: memref<13x128xf32, #tpu.memory_space<vmem>>, %arg8: memref<8x128xf32, #tpu.memory_space<vmem>>) attributes {dimension_semantics = [#tpu.dimension_semantics<arbitrary>], iteration_bounds = array<i64: 1>, scalar_prefetch = 0 : i64, scratch_operands = 0 : i64, tpu.core_type = #tpu.core_type<tc>, window_params = [{pipeline_mode = #tpu.pipeline_mode<synchronous>, transform_indices = @transform_0, window_bounds = array<i64: 8, 128>}, {pipeline_mode = #tpu.pipeline_mode<synchronous>, transform_indices = @transform_1, window_bounds = array<i64: 16, 128>}, {pipeline_mode = #tpu.pipeline_mode<synchronous>, transform_indices = @transform_2, window_bounds = array<i64: 16, 8>}, {pipeline_mode = #tpu.pipeline_mode<synchronous>, transform_indices = @transform_3, window_bounds = array<i64: 8, 16>}, {pipeline_mode = #tpu.pipeline_mode<synchronous>, transform_indices = @transform_4, window_bounds = array<i64: 8, 8>}, {pipeline_mode = #tpu.pipeline_mode<synchronous>, transform_indices = @transform_5, window_bounds = array<i64: 10, 128, 128>}, {pipeline_mode = #tpu.pipeline_mode<synchronous>, transform_indices = @transform_6, window_bounds = array<i64: 13, 128>}, {pipeline_mode = #tpu.pipeline_mode<synchronous>, transform_indices = @transform_7, window_bounds = array<i64: 8, 128>}]} {
    %c0 = arith.constant 0 : index
    %c0_0 = arith.constant 0 : index
    %0 = vector.load %arg1[%c0, %c0_0] : memref<8x128xf32, #tpu.memory_space<vmem>>, vector<8x128xf32>
    %c0_1 = arith.constant 0 : index
    %c0_2 = arith.constant 0 : index
    %1 = vector.load %arg2[%c0_1, %c0_2] : memref<16x128xf32, #tpu.memory_space<vmem>>, vector<16x128xf32>
    %c0_3 = arith.constant 0 : index
    %c0_4 = arith.constant 0 : index
    %2 = vector.load %arg7[%c0_3, %c0_4] : memref<13x128xf32, #tpu.memory_space<vmem>>, vector<13x128xf32>
    %c0_5 = arith.constant 0 : index
    %c0_6 = arith.constant 0 : index
    %3 = vector.load %arg3[%c0_5, %c0_6] : memref<16x8xf32, #tpu.memory_space<vmem>>, vector<16x8xf32>
    %c0_7 = arith.constant 0 : index
    %c0_8 = arith.constant 0 : index
    %4 = vector.load %arg4[%c0_7, %c0_8] : memref<8x16xf32, #tpu.memory_space<vmem>>, vector<8x16xf32>
    %c0_9 = arith.constant 0 : index
    %c0_10 = arith.constant 0 : index
    %5 = vector.load %arg5[%c0_9, %c0_10] : memref<8x8xf32, #tpu.memory_space<vmem>>, vector<8x8xf32>
    %c0_11 = arith.constant 0 : index
    %c0_12 = arith.constant 0 : index
    %c0_13 = arith.constant 0 : index
    %6 = vector.load %arg6[%c0_11, %c0_12, %c0_13] : memref<10x128x128xf32, #tpu.memory_space<vmem>>, vector<1x128x128xf32>
    %7 = vector.shape_cast %6 : vector<1x128x128xf32> to vector<128x128xf32>
    %8 = vector.extract_strided_slice %2 {offsets = [0, 0], sizes = [1, 128], strides = [1, 1]} : vector<13x128xf32> to vector<1x128xf32>
    %c1 = arith.constant 1 : index
    %c0_14 = arith.constant 0 : index
    %c0_15 = arith.constant 0 : index
    %9 = vector.load %arg6[%c1, %c0_14, %c0_15] : memref<10x128x128xf32, #tpu.memory_space<vmem>>, vector<1x128x128xf32>
    %10 = vector.shape_cast %9 : vector<1x128x128xf32> to vector<128x128xf32>
    %11 = vector.extract_strided_slice %2 {offsets = [1, 0], sizes = [1, 128], strides = [1, 1]} : vector<13x128xf32> to vector<1x128xf32>
    %12 = vector.extract_strided_slice %2 {offsets = [2, 0], sizes = [1, 128], strides = [1, 1]} : vector<13x128xf32> to vector<1x128xf32>
    %cst = arith.constant dense<0.000000e+00> : vector<8x128xf32>
    %13 = tpu.matmul %0, %7, %cst {dimension_numbers = #tpu.dot_dimension_numbers<[1], [0], [0], [1], [0, 0, 1, 1], [], []>} : vector<8x128xf32>, vector<128x128xf32>, vector<8x128xf32> -> vector<8x128xf32>
    %14 = vector.broadcast %8 : vector<1x128xf32> to vector<8x128xf32>
    %15 = arith.addf %13, %14 : vector<8x128xf32>
    %cst_16 = arith.constant dense<0.000000e+00> : vector<16x128xf32>
    %16 = tpu.matmul %1, %10, %cst_16 {dimension_numbers = #tpu.dot_dimension_numbers<[1], [0], [0], [1], [0, 0, 1, 1], [], []>} : vector<16x128xf32>, vector<128x128xf32>, vector<16x128xf32> -> vector<16x128xf32>
    %17 = vector.broadcast %11 : vector<1x128xf32> to vector<16x128xf32>
    %18 = arith.addf %16, %17 : vector<16x128xf32>
    %19 = vector.shape_cast %15 : vector<8x128xf32> to vector<1x8x128xf32>
    %20 = vector.shape_cast %18 : vector<16x128xf32> to vector<16x1x128xf32>
    %21 = vector.broadcast %19 : vector<1x8x128xf32> to vector<16x8x128xf32>
    %22 = vector.broadcast %20 : vector<16x1x128xf32> to vector<16x8x128xf32>
    %23 = arith.addf %21, %22 : vector<16x8x128xf32>
    %cst_17 = arith.constant 0.000000e+00 : f32
    %24 = vector.broadcast %cst_17 : f32 to vector<16x8x128xf32>
    %25 = arith.cmpf oge, %23, %24 : vector<16x8x128xf32>
    %cst_18 = arith.constant 2.000000e-01 : f32
    %26 = vector.broadcast %cst_18 : f32 to vector<16x8x128xf32>
    %27 = arith.mulf %26, %23 : vector<16x8x128xf32>
    %28 = arith.select %25, %23, %27 : vector<16x8x128xi1>, vector<16x8x128xf32>
    %29 = vector.shape_cast %12 : vector<1x128xf32> to vector<1x1x128xf32>
    %30 = vector.broadcast %29 : vector<1x1x128xf32> to vector<16x8x128xf32>
    %31 = arith.mulf %28, %30 : vector<16x8x128xf32>
    %cst_19 = arith.constant dense<0.000000e+00> : vector<16x8xf32>
    %32 = vector.multi_reduction <add>, %31, %cst_19 [2] : vector<16x8x128xf32> to vector<16x8xf32>
    %cst_20 = arith.constant 5.000000e-01 : f32
    %33 = vector.broadcast %cst_20 : f32 to vector<16x8xf32>
    %34 = arith.cmpf ogt, %3, %33 : vector<16x8xf32>
    %cst_21 = arith.constant -1.000000e+30 : f32
    %35 = vector.broadcast %cst_21 : f32 to vector<16x8xf32>
    %36 = arith.select %34, %32, %35 : vector<16x8xi1>, vector<16x8xf32>
    %cst_22 = arith.constant dense<0xFF800000> : vector<16xf32>
    %37 = vector.multi_reduction <maximumf>, %36, %cst_22 [1] : vector<16x8xf32> to vector<16xf32>
    %38 = vector.shape_cast %37 : vector<16xf32> to vector<16x1xf32>
    %39 = vector.broadcast %38 : vector<16x1xf32> to vector<16x8xf32>
    %40 = arith.subf %36, %39 : vector<16x8xf32>
    %41 = math.exp %40 : vector<16x8xf32>
    %cst_23 = arith.constant dense<0.000000e+00> : vector<16xf32>
    %42 = vector.multi_reduction <add>, %41, %cst_23 [1] : vector<16x8xf32> to vector<16xf32>
    %43 = vector.shape_cast %42 : vector<16xf32> to vector<16x1xf32>
    %44 = vector.broadcast %43 : vector<16x1xf32> to vector<16x8xf32>
    %45 = arith.divf %41, %44 : vector<16x8xf32>
    %cst_24 = arith.constant dense<0.000000e+00> : vector<16x128xf32>
    %46 = tpu.matmul %45, %15, %cst_24 {dimension_numbers = #tpu.dot_dimension_numbers<[1], [0], [0], [1], [0, 0, 1, 1], [], []>} : vector<16x8xf32>, vector<8x128xf32>, vector<16x128xf32> -> vector<16x128xf32>
    %c2 = arith.constant 2 : index
    %c0_25 = arith.constant 0 : index
    %c0_26 = arith.constant 0 : index
    %47 = vector.load %arg6[%c2, %c0_25, %c0_26] : memref<10x128x128xf32, #tpu.memory_space<vmem>>, vector<1x128x128xf32>
    %48 = vector.shape_cast %47 : vector<1x128x128xf32> to vector<128x128xf32>
    %49 = vector.extract_strided_slice %2 {offsets = [3, 0], sizes = [1, 128], strides = [1, 1]} : vector<13x128xf32> to vector<1x128xf32>
    %c3 = arith.constant 3 : index
    %c0_27 = arith.constant 0 : index
    %c0_28 = arith.constant 0 : index
    %50 = vector.load %arg6[%c3, %c0_27, %c0_28] : memref<10x128x128xf32, #tpu.memory_space<vmem>>, vector<1x128x128xf32>
    %51 = vector.shape_cast %50 : vector<1x128x128xf32> to vector<128x128xf32>
    %52 = vector.extract_strided_slice %2 {offsets = [4, 0], sizes = [1, 128], strides = [1, 1]} : vector<13x128xf32> to vector<1x128xf32>
    %53 = vector.extract_strided_slice %2 {offsets = [5, 0], sizes = [1, 128], strides = [1, 1]} : vector<13x128xf32> to vector<1x128xf32>
    %cst_29 = arith.constant dense<0.000000e+00> : vector<16x128xf32>
    %54 = tpu.matmul %1, %48, %cst_29 {dimension_numbers = #tpu.dot_dimension_numbers<[1], [0], [0], [1], [0, 0, 1, 1], [], []>} : vector<16x128xf32>, vector<128x128xf32>, vector<16x128xf32> -> vector<16x128xf32>
    %55 = vector.broadcast %49 : vector<1x128xf32> to vector<16x128xf32>
    %56 = arith.addf %54, %55 : vector<16x128xf32>
    %cst_30 = arith.constant dense<0.000000e+00> : vector<8x128xf32>
    %57 = tpu.matmul %0, %51, %cst_30 {dimension_numbers = #tpu.dot_dimension_numbers<[1], [0], [0], [1], [0, 0, 1, 1], [], []>} : vector<8x128xf32>, vector<128x128xf32>, vector<8x128xf32> -> vector<8x128xf32>
    %58 = vector.broadcast %52 : vector<1x128xf32> to vector<8x128xf32>
    %59 = arith.addf %57, %58 : vector<8x128xf32>
    %60 = vector.shape_cast %56 : vector<16x128xf32> to vector<1x16x128xf32>
    %61 = vector.shape_cast %59 : vector<8x128xf32> to vector<8x1x128xf32>
    %62 = vector.broadcast %60 : vector<1x16x128xf32> to vector<8x16x128xf32>
    %63 = vector.broadcast %61 : vector<8x1x128xf32> to vector<8x16x128xf32>
    %64 = arith.addf %62, %63 : vector<8x16x128xf32>
    %cst_31 = arith.constant 0.000000e+00 : f32
    %65 = vector.broadcast %cst_31 : f32 to vector<8x16x128xf32>
    %66 = arith.cmpf oge, %64, %65 : vector<8x16x128xf32>
    %cst_32 = arith.constant 2.000000e-01 : f32
    %67 = vector.broadcast %cst_32 : f32 to vector<8x16x128xf32>
    %68 = arith.mulf %67, %64 : vector<8x16x128xf32>
    %69 = arith.select %66, %64, %68 : vector<8x16x128xi1>, vector<8x16x128xf32>
    %70 = vector.shape_cast %53 : vector<1x128xf32> to vector<1x1x128xf32>
    %71 = vector.broadcast %70 : vector<1x1x128xf32> to vector<8x16x128xf32>
    %72 = arith.mulf %69, %71 : vector<8x16x128xf32>
    %cst_33 = arith.constant dense<0.000000e+00> : vector<8x16xf32>
    %73 = vector.multi_reduction <add>, %72, %cst_33 [2] : vector<8x16x128xf32> to vector<8x16xf32>
    %cst_34 = arith.constant 5.000000e-01 : f32
    %74 = vector.broadcast %cst_34 : f32 to vector<8x16xf32>
    %75 = arith.cmpf ogt, %4, %74 : vector<8x16xf32>
    %cst_35 = arith.constant -1.000000e+30 : f32
    %76 = vector.broadcast %cst_35 : f32 to vector<8x16xf32>
    %77 = arith.select %75, %73, %76 : vector<8x16xi1>, vector<8x16xf32>
    %cst_36 = arith.constant dense<0xFF800000> : vector<8xf32>
    %78 = vector.multi_reduction <maximumf>, %77, %cst_36 [1] : vector<8x16xf32> to vector<8xf32>
    %79 = vector.shape_cast %78 : vector<8xf32> to vector<8x1xf32>
    %80 = vector.broadcast %79 : vector<8x1xf32> to vector<8x16xf32>
    %81 = arith.subf %77, %80 : vector<8x16xf32>
    %82 = math.exp %81 : vector<8x16xf32>
    %cst_37 = arith.constant dense<0.000000e+00> : vector<8xf32>
    %83 = vector.multi_reduction <add>, %82, %cst_37 [1] : vector<8x16xf32> to vector<8xf32>
    %84 = vector.shape_cast %83 : vector<8xf32> to vector<8x1xf32>
    %85 = vector.broadcast %84 : vector<8x1xf32> to vector<8x16xf32>
    %86 = arith.divf %82, %85 : vector<8x16xf32>
    %cst_38 = arith.constant dense<0.000000e+00> : vector<8x128xf32>
    %87 = tpu.matmul %86, %56, %cst_38 {dimension_numbers = #tpu.dot_dimension_numbers<[1], [0], [0], [1], [0, 0, 1, 1], [], []>} : vector<8x16xf32>, vector<16x128xf32>, vector<8x128xf32> -> vector<8x128xf32>
    %c4 = arith.constant 4 : index
    %c0_39 = arith.constant 0 : index
    %c0_40 = arith.constant 0 : index
    %88 = vector.load %arg6[%c4, %c0_39, %c0_40] : memref<10x128x128xf32, #tpu.memory_space<vmem>>, vector<1x128x128xf32>
    %89 = vector.shape_cast %88 : vector<1x128x128xf32> to vector<128x128xf32>
    %90 = vector.extract_strided_slice %2 {offsets = [6, 0], sizes = [1, 128], strides = [1, 1]} : vector<13x128xf32> to vector<1x128xf32>
    %c5 = arith.constant 5 : index
    %c0_41 = arith.constant 0 : index
    %c0_42 = arith.constant 0 : index
    %91 = vector.load %arg6[%c5, %c0_41, %c0_42] : memref<10x128x128xf32, #tpu.memory_space<vmem>>, vector<1x128x128xf32>
    %92 = vector.shape_cast %91 : vector<1x128x128xf32> to vector<128x128xf32>
    %93 = vector.extract_strided_slice %2 {offsets = [7, 0], sizes = [1, 128], strides = [1, 1]} : vector<13x128xf32> to vector<1x128xf32>
    %94 = vector.extract_strided_slice %2 {offsets = [8, 0], sizes = [1, 128], strides = [1, 1]} : vector<13x128xf32> to vector<1x128xf32>
    %cst_43 = arith.constant dense<0.000000e+00> : vector<16x128xf32>
    %95 = tpu.matmul %46, %89, %cst_43 {dimension_numbers = #tpu.dot_dimension_numbers<[1], [0], [0], [1], [0, 0, 1, 1], [], []>} : vector<16x128xf32>, vector<128x128xf32>, vector<16x128xf32> -> vector<16x128xf32>
    %96 = vector.broadcast %90 : vector<1x128xf32> to vector<16x128xf32>
    %97 = arith.addf %95, %96 : vector<16x128xf32>
    %cst_44 = arith.constant dense<0.000000e+00> : vector<8x128xf32>
    %98 = tpu.matmul %0, %92, %cst_44 {dimension_numbers = #tpu.dot_dimension_numbers<[1], [0], [0], [1], [0, 0, 1, 1], [], []>} : vector<8x128xf32>, vector<128x128xf32>, vector<8x128xf32> -> vector<8x128xf32>
    %99 = vector.broadcast %93 : vector<1x128xf32> to vector<8x128xf32>
    %100 = arith.addf %98, %99 : vector<8x128xf32>
    %101 = vector.shape_cast %97 : vector<16x128xf32> to vector<1x16x128xf32>
    %102 = vector.shape_cast %100 : vector<8x128xf32> to vector<8x1x128xf32>
    %103 = vector.broadcast %101 : vector<1x16x128xf32> to vector<8x16x128xf32>
    %104 = vector.broadcast %102 : vector<8x1x128xf32> to vector<8x16x128xf32>
    %105 = arith.addf %103, %104 : vector<8x16x128xf32>
    %cst_45 = arith.constant 0.000000e+00 : f32
    %106 = vector.broadcast %cst_45 : f32 to vector<8x16x128xf32>
    %107 = arith.cmpf oge, %105, %106 : vector<8x16x128xf32>
    %cst_46 = arith.constant 2.000000e-01 : f32
    %108 = vector.broadcast %cst_46 : f32 to vector<8x16x128xf32>
    %109 = arith.mulf %108, %105 : vector<8x16x128xf32>
    %110 = arith.select %107, %105, %109 : vector<8x16x128xi1>, vector<8x16x128xf32>
    %111 = vector.shape_cast %94 : vector<1x128xf32> to vector<1x1x128xf32>
    %112 = vector.broadcast %111 : vector<1x1x128xf32> to vector<8x16x128xf32>
    %113 = arith.mulf %110, %112 : vector<8x16x128xf32>
    %cst_47 = arith.constant dense<0.000000e+00> : vector<8x16xf32>
    %114 = vector.multi_reduction <add>, %113, %cst_47 [2] : vector<8x16x128xf32> to vector<8x16xf32>
    %cst_48 = arith.constant 5.000000e-01 : f32
    %115 = vector.broadcast %cst_48 : f32 to vector<8x16xf32>
    %116 = arith.cmpf ogt, %4, %115 : vector<8x16xf32>
    %cst_49 = arith.constant -1.000000e+30 : f32
    %117 = vector.broadcast %cst_49 : f32 to vector<8x16xf32>
    %118 = arith.select %116, %114, %117 : vector<8x16xi1>, vector<8x16xf32>
    %cst_50 = arith.constant dense<0xFF800000> : vector<8xf32>
    %119 = vector.multi_reduction <maximumf>, %118, %cst_50 [1] : vector<8x16xf32> to vector<8xf32>
    %120 = vector.shape_cast %119 : vector<8xf32> to vector<8x1xf32>
    %121 = vector.broadcast %120 : vector<8x1xf32> to vector<8x16xf32>
    %122 = arith.subf %118, %121 : vector<8x16xf32>
    %123 = math.exp %122 : vector<8x16xf32>
    %cst_51 = arith.constant dense<0.000000e+00> : vector<8xf32>
    %124 = vector.multi_reduction <add>, %123, %cst_51 [1] : vector<8x16xf32> to vector<8xf32>
    %125 = vector.shape_cast %124 : vector<8xf32> to vector<8x1xf32>
    %126 = vector.broadcast %125 : vector<8x1xf32> to vector<8x16xf32>
    %127 = arith.divf %123, %126 : vector<8x16xf32>
    %cst_52 = arith.constant dense<0.000000e+00> : vector<8x128xf32>
    %128 = tpu.matmul %127, %97, %cst_52 {dimension_numbers = #tpu.dot_dimension_numbers<[1], [0], [0], [1], [0, 0, 1, 1], [], []>} : vector<8x16xf32>, vector<16x128xf32>, vector<8x128xf32> -> vector<8x128xf32>
    %c6 = arith.constant 6 : index
    %c0_53 = arith.constant 0 : index
    %c0_54 = arith.constant 0 : index
    %129 = vector.load %arg6[%c6, %c0_53, %c0_54] : memref<10x128x128xf32, #tpu.memory_space<vmem>>, vector<1x128x128xf32>
    %130 = vector.shape_cast %129 : vector<1x128x128xf32> to vector<128x128xf32>
    %131 = vector.extract_strided_slice %2 {offsets = [9, 0], sizes = [1, 128], strides = [1, 1]} : vector<13x128xf32> to vector<1x128xf32>
    %c7 = arith.constant 7 : index
    %c0_55 = arith.constant 0 : index
    %c0_56 = arith.constant 0 : index
    %132 = vector.load %arg6[%c7, %c0_55, %c0_56] : memref<10x128x128xf32, #tpu.memory_space<vmem>>, vector<1x128x128xf32>
    %133 = vector.shape_cast %132 : vector<1x128x128xf32> to vector<128x128xf32>
    %134 = vector.extract_strided_slice %2 {offsets = [10, 0], sizes = [1, 128], strides = [1, 1]} : vector<13x128xf32> to vector<1x128xf32>
    %135 = vector.extract_strided_slice %2 {offsets = [11, 0], sizes = [1, 128], strides = [1, 1]} : vector<13x128xf32> to vector<1x128xf32>
    %cst_57 = arith.constant dense<0.000000e+00> : vector<8x128xf32>
    %136 = tpu.matmul %87, %130, %cst_57 {dimension_numbers = #tpu.dot_dimension_numbers<[1], [0], [0], [1], [0, 0, 1, 1], [], []>} : vector<8x128xf32>, vector<128x128xf32>, vector<8x128xf32> -> vector<8x128xf32>
    %137 = vector.broadcast %131 : vector<1x128xf32> to vector<8x128xf32>
    %138 = arith.addf %136, %137 : vector<8x128xf32>
    %cst_58 = arith.constant dense<0.000000e+00> : vector<8x128xf32>
    %139 = tpu.matmul %0, %133, %cst_58 {dimension_numbers = #tpu.dot_dimension_numbers<[1], [0], [0], [1], [0, 0, 1, 1], [], []>} : vector<8x128xf32>, vector<128x128xf32>, vector<8x128xf32> -> vector<8x128xf32>
    %140 = vector.broadcast %134 : vector<1x128xf32> to vector<8x128xf32>
    %141 = arith.addf %139, %140 : vector<8x128xf32>
    %142 = vector.shape_cast %138 : vector<8x128xf32> to vector<1x8x128xf32>
    %143 = vector.shape_cast %141 : vector<8x128xf32> to vector<8x1x128xf32>
    %144 = vector.broadcast %142 : vector<1x8x128xf32> to vector<8x8x128xf32>
    %145 = vector.broadcast %143 : vector<8x1x128xf32> to vector<8x8x128xf32>
    %146 = arith.addf %144, %145 : vector<8x8x128xf32>
    %cst_59 = arith.constant 0.000000e+00 : f32
    %147 = vector.broadcast %cst_59 : f32 to vector<8x8x128xf32>
    %148 = arith.cmpf oge, %146, %147 : vector<8x8x128xf32>
    %cst_60 = arith.constant 2.000000e-01 : f32
    %149 = vector.broadcast %cst_60 : f32 to vector<8x8x128xf32>
    %150 = arith.mulf %149, %146 : vector<8x8x128xf32>
    %151 = arith.select %148, %146, %150 : vector<8x8x128xi1>, vector<8x8x128xf32>
    %152 = vector.shape_cast %135 : vector<1x128xf32> to vector<1x1x128xf32>
    %153 = vector.broadcast %152 : vector<1x1x128xf32> to vector<8x8x128xf32>
    %154 = arith.mulf %151, %153 : vector<8x8x128xf32>
    %cst_61 = arith.constant dense<0.000000e+00> : vector<8x8xf32>
    %155 = vector.multi_reduction <add>, %154, %cst_61 [2] : vector<8x8x128xf32> to vector<8x8xf32>
    %cst_62 = arith.constant 5.000000e-01 : f32
    %156 = vector.broadcast %cst_62 : f32 to vector<8x8xf32>
    %157 = arith.cmpf ogt, %5, %156 : vector<8x8xf32>
    %cst_63 = arith.constant -1.000000e+30 : f32
    %158 = vector.broadcast %cst_63 : f32 to vector<8x8xf32>
    %159 = arith.select %157, %155, %158 : vector<8x8xi1>, vector<8x8xf32>
    %cst_64 = arith.constant dense<0xFF800000> : vector<8xf32>
    %160 = vector.multi_reduction <maximumf>, %159, %cst_64 [1] : vector<8x8xf32> to vector<8xf32>
    %161 = vector.shape_cast %160 : vector<8xf32> to vector<8x1xf32>
    %162 = vector.broadcast %161 : vector<8x1xf32> to vector<8x8xf32>
    %163 = arith.subf %159, %162 : vector<8x8xf32>
    %164 = math.exp %163 : vector<8x8xf32>
    %cst_65 = arith.constant dense<0.000000e+00> : vector<8xf32>
    %165 = vector.multi_reduction <add>, %164, %cst_65 [1] : vector<8x8xf32> to vector<8xf32>
    %166 = vector.shape_cast %165 : vector<8xf32> to vector<8x1xf32>
    %167 = vector.broadcast %166 : vector<8x1xf32> to vector<8x8xf32>
    %168 = arith.divf %164, %167 : vector<8x8xf32>
    %cst_66 = arith.constant dense<0.000000e+00> : vector<8x128xf32>
    %169 = tpu.matmul %168, %138, %cst_66 {dimension_numbers = #tpu.dot_dimension_numbers<[1], [0], [0], [1], [0, 0, 1, 1], [], []>} : vector<8x8xf32>, vector<8x128xf32>, vector<8x128xf32> -> vector<8x128xf32>
    %c8 = arith.constant 8 : index
    %c0_67 = arith.constant 0 : index
    %c0_68 = arith.constant 0 : index
    %170 = vector.load %arg6[%c8, %c0_67, %c0_68] : memref<10x128x128xf32, #tpu.memory_space<vmem>>, vector<1x128x128xf32>
    %171 = vector.shape_cast %170 : vector<1x128x128xf32> to vector<128x128xf32>
    %cst_69 = arith.constant dense<0.000000e+00> : vector<8x128xf32>
    %172 = tpu.matmul %128, %171, %cst_69 {dimension_numbers = #tpu.dot_dimension_numbers<[1], [0], [0], [1], [0, 0, 1, 1], [], []>} : vector<8x128xf32>, vector<128x128xf32>, vector<8x128xf32> -> vector<8x128xf32>
    %c9 = arith.constant 9 : index
    %c0_70 = arith.constant 0 : index
    %c0_71 = arith.constant 0 : index
    %173 = vector.load %arg6[%c9, %c0_70, %c0_71] : memref<10x128x128xf32, #tpu.memory_space<vmem>>, vector<1x128x128xf32>
    %174 = vector.shape_cast %173 : vector<1x128x128xf32> to vector<128x128xf32>
    %cst_72 = arith.constant dense<0.000000e+00> : vector<8x128xf32>
    %175 = tpu.matmul %169, %174, %cst_72 {dimension_numbers = #tpu.dot_dimension_numbers<[1], [0], [0], [1], [0, 0, 1, 1], [], []>} : vector<8x128xf32>, vector<128x128xf32>, vector<8x128xf32> -> vector<8x128xf32>
    %176 = arith.addf %172, %175 : vector<8x128xf32>
    %177 = vector.extract_strided_slice %2 {offsets = [12, 0], sizes = [1, 128], strides = [1, 1]} : vector<13x128xf32> to vector<1x128xf32>
    %178 = vector.broadcast %177 : vector<1x128xf32> to vector<8x128xf32>
    %179 = arith.addf %176, %178 : vector<8x128xf32>
    %c0_73 = arith.constant 0 : index
    %c0_74 = arith.constant 0 : index
    %180 = vector.load %arg8[%c0_73, %c0_74] : memref<8x128xf32, #tpu.memory_space<vmem>>, vector<8x128xf32>
    tpu.vector_store %arg8[%c0_73, %c0_74], %179 {strides = array<i32>} : memref<8x128xf32, #tpu.memory_space<vmem>>, vector<8x128xf32>,
    return
  }
  func.func @transform_0(%arg0: i32) -> (i32, i32) {
    %c0_i32 = arith.constant 0 : i32
    %c0_i32_0 = arith.constant 0 : i32
    %c0_i32_1 = arith.constant 0 : i32
    return %c0_i32, %c0_i32_0 : i32, i32
  }
  func.func @transform_1(%arg0: i32) -> (i32, i32) {
    %c0_i32 = arith.constant 0 : i32
    %c0_i32_0 = arith.constant 0 : i32
    %c0_i32_1 = arith.constant 0 : i32
    return %c0_i32, %c0_i32_0 : i32, i32
  }
  func.func @transform_2(%arg0: i32) -> (i32, i32) {
    %c0_i32 = arith.constant 0 : i32
    %c0_i32_0 = arith.constant 0 : i32
    %c0_i32_1 = arith.constant 0 : i32
    return %c0_i32, %c0_i32_0 : i32, i32
  }
  func.func @transform_3(%arg0: i32) -> (i32, i32) {
    %c0_i32 = arith.constant 0 : i32
    %c0_i32_0 = arith.constant 0 : i32
    %c0_i32_1 = arith.constant 0 : i32
    return %c0_i32, %c0_i32_0 : i32, i32
  }
  func.func @transform_4(%arg0: i32) -> (i32, i32) {
    %c0_i32 = arith.constant 0 : i32
    %c0_i32_0 = arith.constant 0 : i32
    %c0_i32_1 = arith.constant 0 : i32
    return %c0_i32, %c0_i32_0 : i32, i32
  }
  func.func @transform_5(%arg0: i32) -> (i32, i32, i32) {
    %c0_i32 = arith.constant 0 : i32
    %c0_i32_0 = arith.constant 0 : i32
    %c0_i32_1 = arith.constant 0 : i32
    %c0_i32_2 = arith.constant 0 : i32
    return %c0_i32, %c0_i32_0, %c0_i32_1 : i32, i32, i32
  }
  func.func @transform_6(%arg0: i32) -> (i32, i32) {
    %c0_i32 = arith.constant 0 : i32
    %c0_i32_0 = arith.constant 0 : i32
    %c0_i32_1 = arith.constant 0 : i32
    return %c0_i32, %c0_i32_0 : i32, i32
  }
  func.func @transform_7(%arg0: i32) -> (i32, i32) {
    %c0_i32 = arith.constant 0 : i32
    %c0_i32_0 = arith.constant 0 : i32
    %c0_i32_1 = arith.constant 0 : i32
    return %c0_i32, %c0_i32_0 : i32, i32
  }
}

</mosaic_0001>

<llo_original>
// kernel: tpu_custom_call.1
$region0: #{tpu_custom_call.1}
  #allocation0 [shape = 'u32[]', space=smem, size = 0x4, offset = 0x4, fixed_abs, tag = 'smem constant byte address 0x4 - core index']
  #allocation1 [shape = 'u32[144,128]{1,0:T(1,128)}', space=vmem, size = 0x12000, scoped, tag = 'internal scratch']
  %s0 = inlined_call_operand.hbm [shape: f32[8,128], index: 0, kind: input, shape index: {}]
  %s1 = inlined_call_operand.vmem [shape: f32[16,128], index: 1, kind: input, shape index: {}]
  %s2 = inlined_call_operand.vmem [shape: f32[16,8], index: 2, kind: input, shape index: {}]
  %s3 = inlined_call_operand.hbm [shape: f32[8,16], index: 3, kind: input, shape index: {}]
  %s4 = inlined_call_operand.hbm [shape: f32[8,8], index: 4, kind: input, shape index: {}]
  %s5 = inlined_call_operand.hbm [shape: f32[10,128,128], index: 5, kind: input, shape index: {}]
  %s6 = inlined_call_operand.vmem [shape: f32[13,128], index: 6, kind: input, shape index: {}]
  %s7 = inlined_call_operand.hbm [shape: f32[8,128], index: 7, kind: output, shape index: {}]
  %s8 = sld [smem:[#allocation0]]
  $region54: #{tpu_custom_call.1} parent=0
    _
  %s10 = ssub.s32 1, %s8
  %s11 = scalar_select 0, %s10, %s8
  $region1: #{tpu_custom_call.1} parent=0
    #allocation2 [shape = 'u8[4096]{0}', space=vmem, size = 0x1000, scoped, tag = 'input window, operand 0, single buffered']
    #allocation3 [shape = 's32[1]{0}', space=sflag, size = 0x4, scoped, tag = 'scoped memory for tpu_custom_call.1']
    #allocation4 [shape = 's32[1]{0}', space=sflag, size = 0x4, scoped, tag = 'scoped memory for tpu_custom_call.1']
    #allocation5 [shape = 'u8[4096]{0}', space=vmem, size = 0x1000, scoped, tag = 'input window, operand 3, single buffered']
    #allocation6 [shape = 's32[1]{0}', space=sflag, size = 0x4, scoped, tag = 'scoped memory for tpu_custom_call.1']
    #allocation7 [shape = 'u8[4096]{0}', space=vmem, size = 0x1000, scoped, tag = 'input window, operand 4, single buffered']
    #allocation8 [shape = 'u8[655360]{0}', space=vmem, size = 0xa0000, scoped, tag = 'input window, operand 5, single buffered']
    #allocation9 [shape = 's32[1]{0}', space=sflag, size = 0x4, scoped, tag = 'scoped memory for tpu_custom_call.1']
    #allocation10 [shape = 'u8[4096]{0}', space=vmem, size = 0x1000, scoped, tag = 'output window, operand 0, single buffered']
    %12 = vsyncpa [#allocation3], 0
    %13 = vsyncpa [#allocation6], 0
    %14 = vsyncpa [#allocation9], 0
    %15 = vsyncpa [#allocation4], 0
    // Predicated region
    $region2: #{tpu_custom_call.1} parent=1 // pred_check
      _
    $region3: #{tpu_custom_call.1} parent=1 // pred_check_branch
      %17 = sbr.rel (0) target = $region5
    $region4: #{tpu_custom_call.1} parent=1 // pred_region
      %s19 = ssub.s32 128, 128
      %20 = vsyncadd [#allocation3], %s19
      %s22 = sshll.u32 [#allocation2], 4
      %s23 = int_to_ptr.vmem [resolvable:$true] %s22
      %25 = dma.hbm_to_vmem [thread:$0]  %s0, 128, %s23, [#allocation3]
    $region5: #{tpu_custom_call.1} parent=1 // pred_fallthru
      _
    // Predicated region
    $region6: #{tpu_custom_call.1} parent=1 // pred_check
      _
    $region7: #{tpu_custom_call.1} parent=1 // pred_check_branch
      %27 = sbr.rel (0) target = $region9
    $region8: #{tpu_custom_call.1} parent=1 // pred_region
      _
    $region9: #{tpu_custom_call.1} parent=1 // pred_fallthru
      _
    // Predicated region
    $region10: #{tpu_custom_call.1} parent=1 // pred_check
      _
    $region11: #{tpu_custom_call.1} parent=1 // pred_check_branch
      %29 = sbr.rel (0) target = $region13
    $region12: #{tpu_custom_call.1} parent=1 // pred_region
      _
    $region13: #{tpu_custom_call.1} parent=1 // pred_fallthru
      _
    // Predicated region
    $region14: #{tpu_custom_call.1} parent=1 // pred_check
      _
    $region15: #{tpu_custom_call.1} parent=1 // pred_check_branch
      %31 = sbr.rel (0) target = $region17
    $region16: #{tpu_custom_call.1} parent=1 // pred_region
      %s33 = ssub.s32 128, 128
      %34 = vsyncadd [#allocation6], %s33
      %s36 = sshll.u32 [#allocation5], 4
      %s37 = int_to_ptr.vmem [resolvable:$true] %s36
      %39 = dma.hbm_to_vmem [thread:$0]  %s3, 128, %s37, [#allocation6]
    $region17: #{tpu_custom_call.1} parent=1 // pred_fallthru
      _
    // Predicated region
    $region18: #{tpu_custom_call.1} parent=1 // pred_check
      _
    $region19: #{tpu_custom_call.1} parent=1 // pred_check_branch
      %41 = sbr.rel (0) target = $region21
    $region20: #{tpu_custom_call.1} parent=1 // pred_region
      %s43 = ssub.s32 128, 128
      %44 = vsyncadd [#allocation6], %s43
      %s46 = sshll.u32 [#allocation7], 4
      %s47 = int_to_ptr.vmem [resolvable:$true] %s46
      %49 = dma.hbm_to_vmem [thread:$0]  %s4, 128, %s47, [#allocation6]
    $region21: #{tpu_custom_call.1} parent=1 // pred_fallthru
      _
    // Predicated region
    $region22: #{tpu_custom_call.1} parent=1 // pred_check
      _
    $region23: #{tpu_custom_call.1} parent=1 // pred_check_branch
      %51 = sbr.rel (0) target = $region25
    $region24: #{tpu_custom_call.1} parent=1 // pred_region
      %s53 = ssub.s32 20480, 20480
      %54 = vsyncadd [#allocation9], %s53
      %s55 = sshll.u32 [#allocation8], 4
      %s56 = int_to_ptr.vmem [resolvable:$true] %s55
      %61 = dma.hbm_to_vmem [thread:$0]  %s5, 20480, %s56, [#allocation9], 128, 128, 8
    $region25: #{tpu_custom_call.1} parent=1 // pred_fallthru
      _
    // Predicated region
    $region26: #{tpu_custom_call.1} parent=1 // pred_check
      _
    $region27: #{tpu_custom_call.1} parent=1 // pred_check_branch
      %63 = sbr.rel (0) target = $region29
    $region28: #{tpu_custom_call.1} parent=1 // pred_region
      _
    $region29: #{tpu_custom_call.1} parent=1 // pred_fallthru
      _
    // Predicated region
    $region30: #{tpu_custom_call.1} parent=1 // pred_check
      _
    $region31: #{tpu_custom_call.1} parent=1 // pred_check_branch
      %65 = sbr.rel (0) target = $region33
    $region32: #{tpu_custom_call.1} parent=1 // pred_region
      %66 = dma.done [#allocation3], 128
    $region33: #{tpu_custom_call.1} parent=1 // pred_fallthru
      _
    // Predicated region
    $region34: #{tpu_custom_call.1} parent=1 // pred_check
      _
    $region35: #{tpu_custom_call.1} parent=1 // pred_check_branch
      %68 = sbr.rel (0) target = $region37
    $region36: #{tpu_custom_call.1} parent=1 // pred_region
      %69 = dma.done [#allocation6], 128
    $region37: #{tpu_custom_call.1} parent=1 // pred_fallthru
      _
    // Predicated region
    $region38: #{tpu_custom_call.1} parent=1 // pred_check
      _
    $region39: #{tpu_custom_call.1} parent=1 // pred_check_branch
      %71 = sbr.rel (0) target = $region41
    $region40: #{tpu_custom_call.1} parent=1 // pred_region
      %72 = dma.done [#allocation6], 128
    $region41: #{tpu_custom_call.1} parent=1 // pred_fallthru
      _
    // Predicated region
    $region42: #{tpu_custom_call.1} parent=1 // pred_check
      _
    $region43: #{tpu_custom_call.1} parent=1 // pred_check_branch
      %74 = sbr.rel (0) target = $region45
    $region44: #{tpu_custom_call.1} parent=1 // pred_region
      %75 = dma.done [#allocation9], 20480
    $region45: #{tpu_custom_call.1} parent=1 // pred_fallthru
      _
    %v76 = vld [vmem:[#allocation2] sm:$0xff]
    %v77 = vld [vmem:[%s1] sm:$0xff]
    %v78 = vld [vmem:[%s1 + $0x8] sm:$0xff]
    %v79 = vld [vmem:[%s6] sm:$0xff]
    %v80 = vld [vmem:[%s6 + $0x8] sm:$0x1f]
    %v81 = vld [vmem:[%s2] sm:$0xff]
    %v82 = vld [vmem:[%s2 + $0x8] sm:$0xff]
    %v83 = vld [vmem:[#allocation5] sm:$0xff]
    %v84 = vld [vmem:[#allocation7] sm:$0xff]
    %v85 = vld [vmem:[#allocation8] sm:$0xff]
    %v86 = vld [vmem:[#allocation8 + $0x8] sm:$0xff]
    %v87 = vld [vmem:[#allocation8 + $0x10] sm:$0xff]
    %v88 = vld [vmem:[#allocation8 + $0x18] sm:$0xff]
    %v89 = vld [vmem:[#allocation8 + $0x20] sm:$0xff]
    %v90 = vld [vmem:[#allocation8 + $0x28] sm:$0xff]
    %v91 = vld [vmem:[#allocation8 + $0x30] sm:$0xff]
    %v92 = vld [vmem:[#allocation8 + $0x38] sm:$0xff]
    %v93 = vld [vmem:[#allocation8 + $0x40] sm:$0xff]
    %v94 = vld [vmem:[#allocation8 + $0x48] sm:$0xff]
    %v95 = vld [vmem:[#allocation8 + $0x50] sm:$0xff]
    %v96 = vld [vmem:[#allocation8 + $0x58] sm:$0xff]
    %v97 = vld [vmem:[#allocation8 + $0x60] sm:$0xff]
    %v98 = vld [vmem:[#allocation8 + $0x68] sm:$0xff]
    %v99 = vld [vmem:[#allocation8 + $0x70] sm:$0xff]
    %v100 = vld [vmem:[#allocation8 + $0x78] sm:$0xff]
    %s101 = scalar_lea.vmem [#allocation8], 128
    %v102 = vld [vmem:[%s101] sm:$0xff]
    %v103 = vld [vmem:[%s101 + $0x8] sm:$0xff]
    %v104 = vld [vmem:[%s101 + $0x10] sm:$0xff]
    %v105 = vld [vmem:[%s101 + $0x18] sm:$0xff]
    %v106 = vld [vmem:[%s101 + $0x20] sm:$0xff]
    %v107 = vld [vmem:[%s101 + $0x28] sm:$0xff]
    %v108 = vld [vmem:[%s101 + $0x30] sm:$0xff]
    %v109 = vld [vmem:[%s101 + $0x38] sm:$0xff]
    %v110 = vld [vmem:[%s101 + $0x40] sm:$0xff]
    %v111 = vld [vmem:[%s101 + $0x48] sm:$0xff]
    %v112 = vld [vmem:[%s101 + $0x50] sm:$0xff]
    %v113 = vld [vmem:[%s101 + $0x58] sm:$0xff]
    %v114 = vld [vmem:[%s101 + $0x60] sm:$0xff]
    %v115 = vld [vmem:[%s101 + $0x68] sm:$0xff]
    %v116 = vld [vmem:[%s101 + $0x70] sm:$0xff]
    %v117 = vld [vmem:[%s101 + $0x78] sm:$0xff]
    %v118 = vlaneseq
    %v119 = vshrl.u32 %v118, 7
    %v120 = vsub.s32 0, %v119
    %v121 = vrot.slane %v79, %v120
    %122 = vmatprep.subr.mxu0 0.0
    %123 = vmatpush1.msra.mxu0 %v85
    %124 = vmatprep.subr.mxu0 0.0
    %125 = vmatpush1.msra.mxu0 %v86
    %126 = vmatprep.subr.mxu0 0.0
    %127 = vmatpush1.msra.mxu0 %v87
    %128 = vmatprep.subr.mxu0 0.0
    %129 = vmatpush1.msra.mxu0 %v88
    %130 = vmatprep.subr.mxu0 0.0
    %131 = vmatpush1.msra.mxu0 %v89
    %132 = vmatprep.subr.mxu0 0.0
    %133 = vmatpush1.msra.mxu0 %v90
    %134 = vmatprep.subr.mxu0 0.0
    %135 = vmatpush1.msra.mxu0 %v91
    %136 = vmatprep.subr.mxu0 0.0
    %137 = vmatpush1.msra.mxu0 %v92
    %138 = vmatprep.subr.mxu0 0.0
    %139 = vmatpush1.msra.mxu0 %v93
    %140 = vmatprep.subr.mxu0 0.0
    %141 = vmatpush1.msra.mxu0 %v94
    %142 = vmatprep.subr.mxu0 0.0
    %143 = vmatpush1.msra.mxu0 %v95
    %144 = vmatprep.subr.mxu0 0.0
    %145 = vmatpush1.msra.mxu0 %v96
    %146 = vmatprep.subr.mxu0 0.0
    %147 = vmatpush1.msra.mxu0 %v97
    %148 = vmatprep.subr.mxu0 0.0
    %149 = vmatpush1.msra.mxu0 %v98
    %150 = vmatprep.subr.mxu0 0.0
    %151 = vmatpush1.msra.mxu0 %v99
    %152 = vmatprep.subr.mxu0 0.0
    %153 = vmatpush1.msra.mxu0 %v100
    %154 = vmatprep.subr.mxu0 0.0
    %155 = vmatpush1.msra.mxu0 0.0
    %156 = vmatprep.subr.mxu0 0.0
    %157 = vmatpush1.msra.mxu0 0.0
    %158 = vmatprep.subr.mxu0 0.0
    %159 = vmatpush1.msra.mxu0 0.0
    %160 = vmatprep.subr.mxu0 0.0
    %161 = vmatpush1.msra.mxu0 0.0
    %162 = vmatprep.subr.mxu0 0.0
    %163 = vmatpush1.msra.mxu0 0.0
    %164 = vmatprep.subr.mxu0 0.0
    %165 = vmatpush1.msra.mxu0 0.0
    %166 = vmatprep.subr.mxu0 0.0
    %167 = vmatpush1.msra.mxu0 0.0
    %168 = vmatprep.subr.mxu0 0.0
    %169 = vmatpush1.msra.mxu0 0.0
    %170 = vmatprep.subr.mxu0 0.0
    %171 = vmatpush1.msra.mxu0 0.0
    %172 = vmatprep.subr.mxu0 0.0
    %173 = vmatpush1.msra.mxu0 0.0
    %174 = vmatprep.subr.mxu0 0.0
    %175 = vmatpush1.msra.mxu0 0.0
    %176 = vmatprep.subr.mxu0 0.0
    %177 = vmatpush1.msra.mxu0 0.0
    %178 = vmatprep.subr.mxu0 0.0
    %179 = vmatpush1.msra.mxu0 0.0
    %180 = vmatprep.subr.mxu0 0.0
    %181 = vmatpush1.msra.mxu0 0.0
    %182 = vmatprep.subr.mxu0 0.0
    %183 = vmatpush1.msra.mxu0 0.0
    %184 = vmatprep.subr.mxu0 0.0
    %185 = vmatpush1.msra.mxu0 0.0
    %186 = vmatprep.mubr.f32.mxu0 0.0
    %187 = vmatmul.mubr.f32.gmra.mrb[0].mxu0 %v76
    %v188 = vpop.f32.mrb[0].mxu0
    %v189 = vadd.f32 %v121, %v188
    %v190 = vpop.f32.mrb[0].mxu0
    %191 = vdwg.mxu0
    %v192 = vlaneseq
    %v193 = vshrl.u32 %v192, 7
    %v194 = vsub.s32 1, %v193
    %v195 = vrot.slane %v79, %v194
    %196 = vmatprep.subr.mxu0 0.0
    %197 = vmatpush1.msra.mxu0 %v102
    %198 = vmatprep.subr.mxu0 0.0
    %199 = vmatpush1.msra.mxu0 %v103
    %200 = vmatprep.subr.mxu0 0.0
    %201 = vmatpush1.msra.mxu0 %v104
    %202 = vmatprep.subr.mxu0 0.0
    %203 = vmatpush1.msra.mxu0 %v105
    %204 = vmatprep.subr.mxu0 0.0
    %205 = vmatpush1.msra.mxu0 %v106
    %206 = vmatprep.subr.mxu0 0.0
    %207 = vmatpush1.msra.mxu0 %v107
    %208 = vmatprep.subr.mxu0 0.0
    %209 = vmatpush1.msra.mxu0 %v108
    %210 = vmatprep.subr.mxu0 0.0
    %211 = vmatpush1.msra.mxu0 %v109
    %212 = vmatprep.subr.mxu0 0.0
    %213 = vmatpush1.msra.mxu0 %v110
    %214 = vmatprep.subr.mxu0 0.0
    %215 = vmatpush1.msra.mxu0 %v111
    %216 = vmatprep.subr.mxu0 0.0
    %217 = vmatpush1.msra.mxu0 %v112
    %218 = vmatprep.subr.mxu0 0.0
    %219 = vmatpush1.msra.mxu0 %v113
    %220 = vmatprep.subr.mxu0 0.0
    %221 = vmatpush1.msra.mxu0 %v114
    %222 = vmatprep.subr.mxu0 0.0
    %223 = vmatpush1.msra.mxu0 %v115
    %224 = vmatprep.subr.mxu0 0.0
    %225 = vmatpush1.msra.mxu0 %v116
    %226 = vmatprep.subr.mxu0 0.0
    %227 = vmatpush1.msra.mxu0 %v117
    %228 = vmatprep.subr.mxu0 0.0
    %229 = vmatpush1.msra.mxu0 0.0
    %230 = vmatprep.subr.mxu0 0.0
    %231 = vmatpush1.msra.mxu0 0.0
    %232 = vmatprep.subr.mxu0 0.0
    %233 = vmatpush1.msra.mxu0 0.0
    %234 = vmatprep.subr.mxu0 0.0
    %235 = vmatpush1.msra.mxu0 0.0
    %236 = vmatprep.subr.mxu0 0.0
    %237 = vmatpush1.msra.mxu0 0.0
    %238 = vmatprep.subr.mxu0 0.0
    %239 = vmatpush1.msra.mxu0 0.0
    %240 = vmatprep.subr.mxu0 0.0
    %241 = vmatpush1.msra.mxu0 0.0
    %242 = vmatprep.subr.mxu0 0.0
    %243 = vmatpush1.msra.mxu0 0.0
    %244 = vmatprep.subr.mxu0 0.0
    %245 = vmatpush1.msra.mxu0 0.0
    %246 = vmatprep.subr.mxu0 0.0
    %247 = vmatpush1.msra.mxu0 0.0
    %248 = vmatprep.subr.mxu0 0.0
    %249 = vmatpush1.msra.mxu0 0.0
    %250 = vmatprep.subr.mxu0 0.0
    %251 = vmatpush1.msra.mxu0 0.0
    %252 = vmatprep.subr.mxu0 0.0
    %253 = vmatpush1.msra.mxu0 0.0
    %254 = vmatprep.subr.mxu0 0.0
    %255 = vmatpush1.msra.mxu0 0.0
    %256 = vmatprep.subr.mxu0 0.0
    %257 = vmatpush1.msra.mxu0 0.0
    %258 = vmatprep.subr.mxu0 0.0
    %259 = vmatpush1.msra.mxu0 0.0
    %260 = vmatprep.mubr.f32.mxu0 0.0
    %261 = vmatmul.mubr.f32.gmra.mrb[0].mxu0 %v77
    %v262 = vpop.f32.mrb[0].mxu0
    %v263 = vadd.f32 %v195, %v262
    %v264 = vpop.f32.mrb[0].mxu0
    %265 = vmatprep.mubr.f32.mxu0 0.0
    %266 = vmatmul.mubr.f32.gmra.mrb[0].mxu0 %v78
    %v267 = vpop.f32.mrb[0].mxu0
    %v268 = vadd.f32 %v195, %v267
    %v269 = vpop.f32.mrb[0].mxu0
    %270 = vdwg.mxu0
    %v273 = vcombine.high %v263, %v263
    %v275 = vunpack.c.l.s4 1966171168
    %v276 = vunpack.c.0.s8 %v275
    %v277 = vlaneseq
    %v278 = vshrl.u32 %v277, 7
    %v279 = vsub.s32 %v276, %v278
    %v280 = vrot.slane %v263, %v279
    %v282 = vunpack.c.l.s4 1966171168
    %v283 = vunpack.c.0.s8 %v282
    %v284 = vlaneseq
    %v285 = vshrl.u32 %v284, 7
    %v286 = vsub.s32 %v283, %v285
    %v287 = vrot.slane %v273, %v286
    %v288 = vcombine.high %v280, %v280
    %v289 = vcombine.high %v287, %v287
    %v291 = vunpack.c.l.s4 1966171168
    %v292 = vunpack.c.0.s8 %v291
    %v293 = vlaneseq
    %v294 = vshrl.u32 %v293, 7
    %v295 = vsub.s32 %v292, %v294
    %v296 = vrot.slane %v280, %v295
    %v298 = vunpack.c.l.s4 1966171168
    %v299 = vunpack.c.0.s8 %v298
    %v300 = vlaneseq
    %v301 = vshrl.u32 %v300, 7
    %v302 = vsub.s32 %v299, %v301
    %v303 = vrot.slane %v287, %v302
    %v305 = vunpack.c.l.s4 1966171168
    %v306 = vunpack.c.0.s8 %v305
    %v307 = vlaneseq
    %v308 = vshrl.u32 %v307, 7
    %v309 = vsub.s32 %v306, %v308
    %v310 = vrot.slane %v288, %v309
    %v312 = vunpack.c.l.s4 1966171168
    %v313 = vunpack.c.0.s8 %v312
    %v314 = vlaneseq
    %v315 = vshrl.u32 %v314, 7
    %v316 = vsub.s32 %v313, %v315
    %v317 = vrot.slane %v289, %v316
    %v318 = vcombine.high %v296, %v296
    %v319 = vcombine.high %v303, %v303
    %v320 = vcombine.high %v310, %v310
    %v321 = vcombine.high %v317, %v317
    %v322 = vcombine.high %v268, %v268
    %v324 = vunpack.c.l.s4 1966171168
    %v325 = vunpack.c.0.s8 %v324
    %v326 = vlaneseq
    %v327 = vshrl.u32 %v326, 7
    %v328 = vsub.s32 %v325, %v327
    %v329 = vrot.slane %v268, %v328
    %v331 = vunpack.c.l.s4 1966171168
    %v332 = vunpack.c.0.s8 %v331
    %v333 = vlaneseq
    %v334 = vshrl.u32 %v333, 7
    %v335 = vsub.s32 %v332, %v334
    %v336 = vrot.slane %v322, %v335
    %v337 = vcombine.high %v329, %v329
    %v338 = vcombine.high %v336, %v336
    %v340 = vunpack.c.l.s4 1966171168
    %v341 = vunpack.c.0.s8 %v340
    %v342 = vlaneseq
    %v343 = vshrl.u32 %v342, 7
    %v344 = vsub.s32 %v341, %v343
    %v345 = vrot.slane %v329, %v344
    %v347 = vunpack.c.l.s4 1966171168
    %v348 = vunpack.c.0.s8 %v347
    %v349 = vlaneseq
    %v350 = vshrl.u32 %v349, 7
    %v351 = vsub.s32 %v348, %v350
    %v352 = vrot.slane %v336, %v351
    %v354 = vunpack.c.l.s4 1966171168
    %v355 = vunpack.c.0.s8 %v354
    %v356 = vlaneseq
    %v357 = vshrl.u32 %v356, 7
    %v358 = vsub.s32 %v355, %v357
    %v359 = vrot.slane %v337, %v358
    %v361 = vunpack.c.l.s4 1966171168
    %v362 = vunpack.c.0.s8 %v361
    %v363 = vlaneseq
    %v364 = vshrl.u32 %v363, 7
    %v365 = vsub.s32 %v362, %v364
    %v366 = vrot.slane %v338, %v365
    %v367 = vcombine.high %v345, %v345
    %v368 = vcombine.high %v352, %v352
    %v369 = vcombine.high %v359, %v359
    %v370 = vcombine.high %v366, %v366
    %v371 = vlaneseq
    %v372 = vshrl.u32 %v371, 7
    %v373 = vsub.s32 0, %v372
    %v374 = vrot.slane %v296, %v373
    %v375 = vlaneseq
    %v376 = vshrl.u32 %v375, 7
    %v377 = vsub.s32 0, %v376
    %v378 = vrot.slane %v310, %v377
    %v379 = vlaneseq
    %v380 = vshrl.u32 %v379, 7
    %v381 = vsub.s32 0, %v380
    %v382 = vrot.slane %v318, %v381
    %v383 = vlaneseq
    %v384 = vshrl.u32 %v383, 7
    %v385 = vsub.s32 0, %v384
    %v386 = vrot.slane %v320, %v385
    %v387 = vlaneseq
    %v388 = vshrl.u32 %v387, 7
    %v389 = vsub.s32 0, %v388
    %v390 = vrot.slane %v303, %v389
    %v391 = vlaneseq
    %v392 = vshrl.u32 %v391, 7
    %v393 = vsub.s32 0, %v392
    %v394 = vrot.slane %v317, %v393
    %v395 = vlaneseq
    %v396 = vshrl.u32 %v395, 7
    %v397 = vsub.s32 0, %v396
    %v398 = vrot.slane %v319, %v397
    %v399 = vlaneseq
    %v400 = vshrl.u32 %v399, 7
    %v401 = vsub.s32 0, %v400
    %v402 = vrot.slane %v321, %v401
    %v403 = vlaneseq
    %v404 = vshrl.u32 %v403, 7
    %v405 = vsub.s32 0, %v404
    %v406 = vrot.slane %v345, %v405
    %v407 = vlaneseq
    %v408 = vshrl.u32 %v407, 7
    %v409 = vsub.s32 0, %v408
    %v410 = vrot.slane %v359, %v409
    %v411 = vlaneseq
    %v412 = vshrl.u32 %v411, 7
    %v413 = vsub.s32 0, %v412
    %v414 = vrot.slane %v367, %v413
    %v415 = vlaneseq
    %v416 = vshrl.u32 %v415, 7
    %v417 = vsub.s32 0, %v416
    %v418 = vrot.slane %v369, %v417
    %v419 = vlaneseq
    %v420 = vshrl.u32 %v419, 7
    %v421 = vsub.s32 0, %v420
    %v422 = vrot.slane %v352, %v421
    %v423 = vlaneseq
    %v424 = vshrl.u32 %v423, 7
    %v425 = vsub.s32 0, %v424
    %v426 = vrot.slane %v366, %v425
    %v427 = vlaneseq
    %v428 = vshrl.u32 %v427, 7
    %v429 = vsub.s32 0, %v428
    %v430 = vrot.slane %v368, %v429
    %v431 = vlaneseq
    %v432 = vshrl.u32 %v431, 7
    %v433 = vsub.s32 0, %v432
    %v434 = vrot.slane %v370, %v433
    %v451 = vadd.f32 %v189, %v374
    %v452 = vadd.f32 %v189, %v378
    %v453 = vadd.f32 %v189, %v382
    %v454 = vadd.f32 %v189, %v386
    %v455 = vadd.f32 %v189, %v390
    %v456 = vadd.f32 %v189, %v394
    %v457 = vadd.f32 %v189, %v398
    %v458 = vadd.f32 %v189, %v402
    %v459 = vadd.f32 %v189, %v406
    %v460 = vadd.f32 %v189, %v410
    %v461 = vadd.f32 %v189, %v414
    %v462 = vadd.f32 %v189, %v418
    %v463 = vadd.f32 %v189, %v422
    %v464 = vadd.f32 %v189, %v426
    %v465 = vadd.f32 %v189, %v430
    %v466 = vadd.f32 %v189, %v434
    %vm467 = vcmp.ge.f32.partialorder %v451, 0.0
    %vm468 = vcmp.ge.f32.partialorder %v452, 0.0
    %vm469 = vcmp.ge.f32.partialorder %v453, 0.0
    %vm470 = vcmp.ge.f32.partialorder %v454, 0.0
    %vm471 = vcmp.ge.f32.partialorder %v455, 0.0
    %vm472 = vcmp.ge.f32.partialorder %v456, 0.0
    %vm473 = vcmp.ge.f32.partialorder %v457, 0.0
    %vm474 = vcmp.ge.f32.partialorder %v458, 0.0
    %vm475 = vcmp.ge.f32.partialorder %v459, 0.0
    %vm476 = vcmp.ge.f32.partialorder %v460, 0.0
    %vm477 = vcmp.ge.f32.partialorder %v461, 0.0
    %vm478 = vcmp.ge.f32.partialorder %v462, 0.0
    %vm479 = vcmp.ge.f32.partialorder %v463, 0.0
    %vm480 = vcmp.ge.f32.partialorder %v464, 0.0
    %vm481 = vcmp.ge.f32.partialorder %v465, 0.0
    %vm482 = vcmp.ge.f32.partialorder %v466, 0.0
    %v483 = vmul.f32 %v451, 0.2
    %v484 = vmul.f32 %v452, 0.2
    %v485 = vmul.f32 %v453, 0.2
    %v486 = vmul.f32 %v454, 0.2
    %v487 = vmul.f32 %v455, 0.2
    %v488 = vmul.f32 %v456, 0.2
    %v489 = vmul.f32 %v457, 0.2
    %v490 = vmul.f32 %v458, 0.2
    %v491 = vmul.f32 %v459, 0.2
    %v492 = vmul.f32 %v460, 0.2
    %v493 = vmul.f32 %v461, 0.2
    %v494 = vmul.f32 %v462, 0.2
    %v495 = vmul.f32 %v463, 0.2
    %v496 = vmul.f32 %v464, 0.2
    %v497 = vmul.f32 %v465, 0.2
    %v498 = vmul.f32 %v466, 0.2
    %v499 = vsel %vm467, %v451, %v483
    %v500 = vsel %vm468, %v452, %v484
    %v501 = vsel %vm469, %v453, %v485
    %v502 = vsel %vm470, %v454, %v486
    %v503 = vsel %vm471, %v455, %v487
    %v504 = vsel %vm472, %v456, %v488
    %v505 = vsel %vm473, %v457, %v489
    %v506 = vsel %vm474, %v458, %v490
    %v507 = vsel %vm475, %v459, %v491
    %v508 = vsel %vm476, %v460, %v492
    %v509 = vsel %vm477, %v461, %v493
    %v510 = vsel %vm478, %v462, %v494
    %v511 = vsel %vm479, %v463, %v495
    %v512 = vsel %vm480, %v464, %v496
    %v513 = vsel %vm481, %v465, %v497
    %v514 = vsel %vm482, %v466, %v498
    %v515 = vlaneseq
    %v516 = vshrl.u32 %v515, 7
    %v517 = vsub.s32 2, %v516
    %v518 = vrot.slane %v79, %v517
    %v519 = vmul.f32 %v499, %v518
    %v520 = vmul.f32 %v500, %v518
    %v521 = vmul.f32 %v501, %v518
    %v522 = vmul.f32 %v502, %v518
    %v523 = vmul.f32 %v503, %v518
    %v524 = vmul.f32 %v504, %v518
    %v525 = vmul.f32 %v505, %v518
    %v526 = vmul.f32 %v506, %v518
    %v527 = vmul.f32 %v507, %v518
    %v528 = vmul.f32 %v508, %v518
    %v529 = vmul.f32 %v509, %v518
    %v530 = vmul.f32 %v510, %v518
    %v531 = vmul.f32 %v511, %v518
    %v532 = vmul.f32 %v512, %v518
    %v533 = vmul.f32 %v513, %v518
    %v534 = vmul.f32 %v514, %v518
    %535 = vadd.xlane.f32.xlu0 %v519
    %v536 = vpop.xlane.xlu0 %535
    %537 = vadd.xlane.f32.xlu0 %v520
    %v538 = vpop.xlane.xlu0 %537
    %539 = vadd.xlane.f32.xlu0 %v521
    %v540 = vpop.xlane.xlu0 %539
    %541 = vadd.xlane.f32.xlu0 %v522
    %v542 = vpop.xlane.xlu0 %541
    %543 = vadd.xlane.f32.xlu0 %v523
    %v544 = vpop.xlane.xlu0 %543
    %545 = vadd.xlane.f32.xlu0 %v524
    %v546 = vpop.xlane.xlu0 %545
    %547 = vadd.xlane.f32.xlu0 %v525
    %v548 = vpop.xlane.xlu0 %547
    %549 = vadd.xlane.f32.xlu0 %v526
    %v550 = vpop.xlane.xlu0 %549
    %551 = vadd.xlane.f32.xlu0 %v527
    %v552 = vpop.xlane.xlu0 %551
    %553 = vadd.xlane.f32.xlu0 %v528
    %v554 = vpop.xlane.xlu0 %553
    %555 = vadd.xlane.f32.xlu0 %v529
    %v556 = vpop.xlane.xlu0 %555
    %557 = vadd.xlane.f32.xlu0 %v530
    %v558 = vpop.xlane.xlu0 %557
    %559 = vadd.xlane.f32.xlu0 %v531
    %v560 = vpop.xlane.xlu0 %559
    %561 = vadd.xlane.f32.xlu0 %v532
    %v562 = vpop.xlane.xlu0 %561
    %563 = vadd.xlane.f32.xlu0 %v533
    %v564 = vpop.xlane.xlu0 %563
    %565 = vadd.xlane.f32.xlu0 %v534
    %v566 = vpop.xlane.xlu0 %565
    %vm567 = vcmp.gt.f32.partialorder %v81, 0.5
    %vm568 = vcmp.gt.f32.partialorder %v82, 0.5
    %v585 = vlaneseq
    %v586 = vand.u32 %v585, 127
    %v587 = vlaneseq
    %v588 = vshrl.u32 %v587, 7
    %v589 = vsub.s32 %v586, %v588
    %v590 = vrot.slane %v536, %v589
    %v591 = vlaneseq
    %v592 = vshrl.u32 %v591, 7
    %v593 = vsub.s32 %v586, %v592
    %v594 = vrot.slane %v538, %v593
    %v595 = vlaneseq
    %v596 = vshrl.u32 %v595, 7
    %v597 = vsub.s32 %v586, %v596
    %v598 = vrot.slane %v540, %v597
    %v599 = vlaneseq
    %v600 = vshrl.u32 %v599, 7
    %v601 = vsub.s32 %v586, %v600
    %v602 = vrot.slane %v542, %v601
    %v603 = vlaneseq
    %v604 = vshrl.u32 %v603, 7
    %v605 = vsub.s32 %v586, %v604
    %v606 = vrot.slane %v544, %v605
    %v607 = vlaneseq
    %v608 = vshrl.u32 %v607, 7
    %v609 = vsub.s32 %v586, %v608
    %v610 = vrot.slane %v546, %v609
    %v611 = vlaneseq
    %v612 = vshrl.u32 %v611, 7
    %v613 = vsub.s32 %v586, %v612
    %v614 = vrot.slane %v548, %v613
    %v615 = vlaneseq
    %v616 = vshrl.u32 %v615, 7
    %v617 = vsub.s32 %v586, %v616
    %v618 = vrot.slane %v550, %v617
    %v619 = vlaneseq
    %v620 = vshrl.u32 %v619, 7
    %v621 = vsub.s32 %v586, %v620
    %v622 = vrot.slane %v552, %v621
    %v623 = vlaneseq
    %v624 = vshrl.u32 %v623, 7
    %v625 = vsub.s32 %v586, %v624
    %v626 = vrot.slane %v554, %v625
    %v627 = vlaneseq
    %v628 = vshrl.u32 %v627, 7
    %v629 = vsub.s32 %v586, %v628
    %v630 = vrot.slane %v556, %v629
    %v631 = vlaneseq
    %v632 = vshrl.u32 %v631, 7
    %v633 = vsub.s32 %v586, %v632
    %v634 = vrot.slane %v558, %v633
    %v635 = vlaneseq
    %v636 = vshrl.u32 %v635, 7
    %v637 = vsub.s32 %v586, %v636
    %v638 = vrot.slane %v560, %v637
    %v639 = vlaneseq
    %v640 = vshrl.u32 %v639, 7
    %v641 = vsub.s32 %v586, %v640
    %v642 = vrot.slane %v562, %v641
    %v643 = vlaneseq
    %v644 = vshrl.u32 %v643, 7
    %v645 = vsub.s32 %v586, %v644
    %v646 = vrot.slane %v564, %v645
    %v647 = vlaneseq
    %v648 = vshrl.u32 %v647, 7
    %v649 = vsub.s32 %v586, %v648
    %v650 = vrot.slane %v566, %v649
    %vm651 = vcmask 1041409
    %v652 = vsel %vm651, %v594, %v590
    %vm653 = vcmask 1042434
    %v654 = vsel %vm653, %v598, %v652
    %vm655 = vcmask 1043459
    %v656 = vsel %vm655, %v602, %v654
    %vm657 = vcmask 1044484
    %v658 = vsel %vm657, %v606, %v656
    %vm659 = vcmask 1045509
    %v660 = vsel %vm659, %v610, %v658
    %vm661 = vcmask 1046534
    %v662 = vsel %vm661, %v614, %v660
    %vm663 = vcmask 1047559
    %v664 = vsel %vm663, %v618, %v662
    %v665 = vsel %vm651, %v626, %v622
    %v666 = vsel %vm653, %v630, %v665
    %v667 = vsel %vm655, %v634, %v666
    %v668 = vsel %vm657, %v638, %v667
    %v669 = vsel %vm659, %v642, %v668
    %v670 = vsel %vm661, %v646, %v669
    %v671 = vsel %vm663, %v650, %v670
    %v674 = vsel %vm567, %v664, -1e+30
    %v675 = vsel %vm568, %v671, -1e+30
    %vm676 = vcmask 64512
    %v677 = vsel %vm676, %v674, -inf
    %678 = vmax.xlane.f32.xlu0 %v677
    %v679 = vpop.xlane.xlu0 %678
    %v680 = vsel %vm676, %v675, -inf
    %681 = vmax.xlane.f32.xlu0 %v680
    %v682 = vpop.xlane.xlu0 %681
    %v683 = vsub.f32 %v674, %v679
    %v684 = vsub.f32 %v675, %v682
    %v685 = vmul.f32 %v683, 1.442695
    %v686 = vpow.pop %v685
    %v687 = vmul.f32 %v684, 1.442695
    %v688 = vpow.pop %v687
    %v689 = vsel %vm676, %v686, 0.0
    %690 = vadd.xlane.f32.xlu0 %v689
    %v691 = vpop.xlane.xlu0 %690
    %v692 = vsel %vm676, %v688, 0.0
    %693 = vadd.xlane.f32.xlu0 %v692
    %v694 = vpop.xlane.xlu0 %693
    %v695 = vrcp.pop %v691
    %v696 = vmul.f32 %v686, %v695
    %v697 = vrcp.pop %v694
    %v698 = vmul.f32 %v688, %v697
    %v700 = vsel %vm676, %v696, 0
    %v703 = vsel %vm676, %v698, 0
    %705 = vmatprep.subr.mxu0 0.0
    %706 = vmatpush1.msra.mxu0 %v189
    %707 = vmatprep.subr.mxu0 0.0
    %708 = vmatpush1.msra.mxu0 0.0
    %709 = vmatprep.subr.mxu0 0.0
    %710 = vmatpush1.msra.mxu0 0.0
    %711 = vmatprep.subr.mxu0 0.0
    %712 = vmatpush1.msra.mxu0 0.0
    %713 = vmatprep.subr.mxu0 0.0
    %714 = vmatpush1.msra.mxu0 0.0
    %715 = vmatprep.subr.mxu0 0.0
    %716 = vmatpush1.msra.mxu0 0.0
    %717 = vmatprep.subr.mxu0 0.0
    %718 = vmatpush1.msra.mxu0 0.0
    %719 = vmatprep.subr.mxu0 0.0
    %720 = vmatpush1.msra.mxu0 0.0
    %721 = vmatprep.subr.mxu0 0.0
    %722 = vmatpush1.msra.mxu0 0.0
    %723 = vmatprep.subr.mxu0 0.0
    %724 = vmatpush1.msra.mxu0 0.0
    %725 = vmatprep.subr.mxu0 0.0
    %726 = vmatpush1.msra.mxu0 0.0
    %727 = vmatprep.subr.mxu0 0.0
    %728 = vmatpush1.msra.mxu0 0.0
    %729 = vmatprep.subr.mxu0 0.0
    %730 = vmatpush1.msra.mxu0 0.0
    %731 = vmatprep.subr.mxu0 0.0
    %732 = vmatpush1.msra.mxu0 0.0
    %733 = vmatprep.subr.mxu0 0.0
    %734 = vmatpush1.msra.mxu0 0.0
    %735 = vmatprep.subr.mxu0 0.0
    %736 = vmatpush1.msra.mxu0 0.0
    %737 = vmatprep.subr.mxu0 0.0
    %738 = vmatpush1.msra.mxu0 0.0
    %739 = vmatprep.subr.mxu0 0.0
    %740 = vmatpush1.msra.mxu0 0.0
    %741 = vmatprep.subr.mxu0 0.0
    %742 = vmatpush1.msra.mxu0 0.0
    %743 = vmatprep.subr.mxu0 0.0
    %744 = vmatpush1.msra.mxu0 0.0
    %745 = vmatprep.subr.mxu0 0.0
    %746 = vmatpush1.msra.mxu0 0.0
    %747 = vmatprep.subr.mxu0 0.0
    %748 = vmatpush1.msra.mxu0 0.0
    %749 = vmatprep.subr.mxu0 0.0
    %750 = vmatpush1.msra.mxu0 0.0
    %751 = vmatprep.subr.mxu0 0.0
    %752 = vmatpush1.msra.mxu0 0.0
    %753 = vmatprep.subr.mxu0 0.0
    %754 = vmatpush1.msra.mxu0 0.0
    %755 = vmatprep.subr.mxu0 0.0
    %756 = vmatpush1.msra.mxu0 0.0
    %757 = vmatprep.subr.mxu0 0.0
    %758 = vmatpush1.msra.mxu0 0.0
    %759 = vmatprep.subr.mxu0 0.0
    %760 = vmatpush1.msra.mxu0 0.0
    %761 = vmatprep.subr.mxu0 0.0
    %762 = vmatpush1.msra.mxu0 0.0
    %763 = vmatprep.subr.mxu0 0.0
    %764 = vmatpush1.msra.mxu0 0.0
    %765 = vmatprep.subr.mxu0 0.0
    %766 = vmatpush1.msra.mxu0 0.0
    %767 = vmatprep.subr.mxu0 0.0
    %768 = vmatpush1.msra.mxu0 0.0
    %769 = vmatprep.mubr.f32.mxu0 0.0
    %770 = vmatmul.mubr.f32.gmra.mrb[0].mxu0 %v700
    %v771 = vpop.f32.mrb[0].mxu0
    %v772 = vadd.f32 0.0, %v771
    %v773 = vpop.f32.mrb[0].mxu0
    %774 = vmatprep.mubr.f32.mxu0 0.0
    %775 = vmatmul.mubr.f32.gmra.mrb[0].mxu0 %v703
    %v776 = vpop.f32.mrb[0].mxu0
    %v777 = vadd.f32 0.0, %v776
    %v778 = vpop.f32.mrb[0].mxu0
    %779 = vdwg.mxu0
    %s780 = scalar_lea.vmem [#allocation8], 256
    %v781 = vld [vmem:[%s780] sm:$0xff]
    %v782 = vld [vmem:[%s780 + $0x8] sm:$0xff]
    %v783 = vld [vmem:[%s780 + $0x10] sm:$0xff]
    %v784 = vld [vmem:[%s780 + $0x18] sm:$0xff]
    %v785 = vld [vmem:[%s780 + $0x20] sm:$0xff]
    %v786 = vld [vmem:[%s780 + $0x28] sm:$0xff]
    %v787 = vld [vmem:[%s780 + $0x30] sm:$0xff]
    %v788 = vld [vmem:[%s780 + $0x38] sm:$0xff]
    %v789 = vld [vmem:[%s780 + $0x40] sm:$0xff]
    %v790 = vld [vmem:[%s780 + $0x48] sm:$0xff]
    %v791 = vld [vmem:[%s780 + $0x50] sm:$0xff]
    %v792 = vld [vmem:[%s780 + $0x58] sm:$0xff]
    %v793 = vld [vmem:[%s780 + $0x60] sm:$0xff]
    %v794 = vld [vmem:[%s780 + $0x68] sm:$0xff]
    %v795 = vld [vmem:[%s780 + $0x70] sm:$0xff]
    %v796 = vld [vmem:[%s780 + $0x78] sm:$0xff]
    %s797 = scalar_lea.vmem [#allocation8], 384
    %v798 = vld [vmem:[%s797] sm:$0xff]
    %v799 = vld [vmem:[%s797 + $0x8] sm:$0xff]
    %v800 = vld [vmem:[%s797 + $0x10] sm:$0xff]
    %v801 = vld [vmem:[%s797 + $0x18] sm:$0xff]
    %v802 = vld [vmem:[%s797 + $0x20] sm:$0xff]
    %v803 = vld [vmem:[%s797 + $0x28] sm:$0xff]
    %v804 = vld [vmem:[%s797 + $0x30] sm:$0xff]
    %v805 = vld [vmem:[%s797 + $0x38] sm:$0xff]
    %v806 = vld [vmem:[%s797 + $0x40] sm:$0xff]
    %v807 = vld [vmem:[%s797 + $0x48] sm:$0xff]
    %v808 = vld [vmem:[%s797 + $0x50] sm:$0xff]
    %v809 = vld [vmem:[%s797 + $0x58] sm:$0xff]
    %v810 = vld [vmem:[%s797 + $0x60] sm:$0xff]
    %v811 = vld [vmem:[%s797 + $0x68] sm:$0xff]
    %v812 = vld [vmem:[%s797 + $0x70] sm:$0xff]
    %v813 = vld [vmem:[%s797 + $0x78] sm:$0xff]
    %v814 = vlaneseq
    %v815 = vshrl.u32 %v814, 7
    %v816 = vsub.s32 3, %v815
    %v817 = vrot.slane %v79, %v816
    %818 = vmatprep.subr.mxu0 0.0
    %819 = vmatpush1.msra.mxu0 %v781
    %820 = vmatprep.subr.mxu0 0.0
    %821 = vmatpush1.msra.mxu0 %v782
    %822 = vmatprep.subr.mxu0 0.0
    %823 = vmatpush1.msra.mxu0 %v783
    %824 = vmatprep.subr.mxu0 0.0
    %825 = vmatpush1.msra.mxu0 %v784
    %826 = vmatprep.subr.mxu0 0.0
    %827 = vmatpush1.msra.mxu0 %v785
    %828 = vmatprep.subr.mxu0 0.0
    %829 = vmatpush1.msra.mxu0 %v786
    %830 = vmatprep.subr.mxu0 0.0
    %831 = vmatpush1.msra.mxu0 %v787
    %832 = vmatprep.subr.mxu0 0.0
    %833 = vmatpush1.msra.mxu0 %v788
    %834 = vmatprep.subr.mxu0 0.0
    %835 = vmatpush1.msra.mxu0 %v789
    %836 = vmatprep.subr.mxu0 0.0
    %837 = vmatpush1.msra.mxu0 %v790
    %838 = vmatprep.subr.mxu0 0.0
    %839 = vmatpush1.msra.mxu0 %v791
    %840 = vmatprep.subr.mxu0 0.0
    %841 = vmatpush1.msra.mxu0 %v792
    %842 = vmatprep.subr.mxu0 0.0
    %843 = vmatpush1.msra.mxu0 %v793
    %844 = vmatprep.subr.mxu0 0.0
    %845 = vmatpush1.msra.mxu0 %v794
    %846 = vmatprep.subr.mxu0 0.0
    %847 = vmatpush1.msra.mxu0 %v795
    %848 = vmatprep.subr.mxu0 0.0
    %849 = vmatpush1.msra.mxu0 %v796
    %850 = vmatprep.subr.mxu0 0.0
    %851 = vmatpush1.msra.mxu0 0.0
    %852 = vmatprep.subr.mxu0 0.0
    %853 = vmatpush1.msra.mxu0 0.0
    %854 = vmatprep.subr.mxu0 0.0
    %855 = vmatpush1.msra.mxu0 0.0
    %856 = vmatprep.subr.mxu0 0.0
    %857 = vmatpush1.msra.mxu0 0.0
    %858 = vmatprep.subr.mxu0 0.0
    %859 = vmatpush1.msra.mxu0 0.0
    %860 = vmatprep.subr.mxu0 0.0
    %861 = vmatpush1.msra.mxu0 0.0
    %862 = vmatprep.subr.mxu0 0.0
    %863 = vmatpush1.msra.mxu0 0.0
    %864 = vmatprep.subr.mxu0 0.0
    %865 = vmatpush1.msra.mxu0 0.0
    %866 = vmatprep.subr.mxu0 0.0
    %867 = vmatpush1.msra.mxu0 0.0
    %868 = vmatprep.subr.mxu0 0.0
    %869 = vmatpush1.msra.mxu0 0.0
    %870 = vmatprep.subr.mxu0 0.0
    %871 = vmatpush1.msra.mxu0 0.0
    %872 = vmatprep.subr.mxu0 0.0
    %873 = vmatpush1.msra.mxu0 0.0
    %874 = vmatprep.subr.mxu0 0.0
    %875 = vmatpush1.msra.mxu0 0.0
    %876 = vmatprep.subr.mxu0 0.0
    %877 = vmatpush1.msra.mxu0 0.0
    %878 = vmatprep.subr.mxu0 0.0
    %879 = vmatpush1.msra.mxu0 0.0
    %880 = vmatprep.subr.mxu0 0.0
    %881 = vmatpush1.msra.mxu0 0.0
    %882 = vmatprep.mubr.f32.mxu0 0.0
    %883 = vmatmul.mubr.f32.gmra.mrb[0].mxu0 %v77
    %v884 = vpop.f32.mrb[0].mxu0
    %v885 = vadd.f32 %v817, %v884
    %v886 = vpop.f32.mrb[0].mxu0
    %887 = vmatprep.mubr.f32.mxu0 0.0
    %888 = vmatmul.mubr.f32.gmra.mrb[0].mxu0 %v78
    %v889 = vpop.f32.mrb[0].mxu0
    %v890 = vadd.f32 %v817, %v889
    %v891 = vpop.f32.mrb[0].mxu0
    %892 = vdwg.mxu0
    %v893 = vlaneseq
    %v894 = vshrl.u32 %v893, 7
    %v895 = vsub.s32 4, %v894
    %v896 = vrot.slane %v79, %v895
    %897 = vmatprep.subr.mxu0 0.0
    %898 = vmatpush1.msra.mxu0 %v798
    %899 = vmatprep.subr.mxu0 0.0
    %900 = vmatpush1.msra.mxu0 %v799
    %901 = vmatprep.subr.mxu0 0.0
    %902 = vmatpush1.msra.mxu0 %v800
    %903 = vmatprep.subr.mxu0 0.0
    %904 = vmatpush1.msra.mxu0 %v801
    %905 = vmatprep.subr.mxu0 0.0
    %906 = vmatpush1.msra.mxu0 %v802
    %907 = vmatprep.subr.mxu0 0.0
    %908 = vmatpush1.msra.mxu0 %v803
    %909 = vmatprep.subr.mxu0 0.0
    %910 = vmatpush1.msra.mxu0 %v804
    %911 = vmatprep.subr.mxu0 0.0
    %912 = vmatpush1.msra.mxu0 %v805
    %913 = vmatprep.subr.mxu0 0.0
    %914 = vmatpush1.msra.mxu0 %v806
    %915 = vmatprep.subr.mxu0 0.0
    %916 = vmatpush1.msra.mxu0 %v807
    %917 = vmatprep.subr.mxu0 0.0
    %918 = vmatpush1.msra.mxu0 %v808
    %919 = vmatprep.subr.mxu0 0.0
    %920 = vmatpush1.msra.mxu0 %v809
    %921 = vmatprep.subr.mxu0 0.0
    %922 = vmatpush1.msra.mxu0 %v810
    %923 = vmatprep.subr.mxu0 0.0
    %924 = vmatpush1.msra.mxu0 %v811
    %925 = vmatprep.subr.mxu0 0.0
    %926 = vmatpush1.msra.mxu0 %v812
    %927 = vmatprep.subr.mxu0 0.0
    %928 = vmatpush1.msra.mxu0 %v813
    %929 = vmatprep.subr.mxu0 0.0
    %930 = vmatpush1.msra.mxu0 0.0
    %931 = vmatprep.subr.mxu0 0.0
    %932 = vmatpush1.msra.mxu0 0.0
    %933 = vmatprep.subr.mxu0 0.0
    %934 = vmatpush1.msra.mxu0 0.0
    %935 = vmatprep.subr.mxu0 0.0
    %936 = vmatpush1.msra.mxu0 0.0
    %937 = vmatprep.subr.mxu0 0.0
    %938 = vmatpush1.msra.mxu0 0.0
    %939 = vmatprep.subr.mxu0 0.0
    %940 = vmatpush1.msra.mxu0 0.0
    %941 = vmatprep.subr.mxu0 0.0
    %942 = vmatpush1.msra.mxu0 0.0
    %943 = vmatprep.subr.mxu0 0.0
    %944 = vmatpush1.msra.mxu0 0.0
    %945 = vmatprep.subr.mxu0 0.0
    %946 = vmatpush1.msra.mxu0 0.0
    %947 = vmatprep.subr.mxu0 0.0
    %948 = vmatpush1.msra.mxu0 0.0
    %949 = vmatprep.subr.mxu0 0.0
    %950 = vmatpush1.msra.mxu0 0.0
    %951 = vmatprep.subr.mxu0 0.0
    %952 = vmatpush1.msra.mxu0 0.0
    %953 = vmatprep.subr.mxu0 0.0
    %954 = vmatpush1.msra.mxu0 0.0
    %955 = vmatprep.subr.mxu0 0.0
    %956 = vmatpush1.msra.mxu0 0.0
    %957 = vmatprep.subr.mxu0 0.0
    %958 = vmatpush1.msra.mxu0 0.0
    %959 = vmatprep.subr.mxu0 0.0
    %960 = vmatpush1.msra.mxu0 0.0
    %961 = vmatprep.mubr.f32.mxu0 0.0
    %962 = vmatmul.mubr.f32.gmra.mrb[0].mxu0 %v76
    %v963 = vpop.f32.mrb[0].mxu0
    %v964 = vadd.f32 %v896, %v963
    %v965 = vpop.f32.mrb[0].mxu0
    %966 = vdwg.mxu0
    %v968 = vcombine.high %v964, %v964
    %v970 = vunpack.c.l.s4 1966171168
    %v971 = vunpack.c.0.s8 %v970
    %v972 = vlaneseq
    %v973 = vshrl.u32 %v972, 7
    %v974 = vsub.s32 %v971, %v973
    %v975 = vrot.slane %v964, %v974
    %v977 = vunpack.c.l.s4 1966171168
    %v978 = vunpack.c.0.s8 %v977
    %v979 = vlaneseq
    %v980 = vshrl.u32 %v979, 7
    %v981 = vsub.s32 %v978, %v980
    %v982 = vrot.slane %v968, %v981
    %v983 = vcombine.high %v975, %v975
    %v984 = vcombine.high %v982, %v982
    %v986 = vunpack.c.l.s4 1966171168
    %v987 = vunpack.c.0.s8 %v986
    %v988 = vlaneseq
    %v989 = vshrl.u32 %v988, 7
    %v990 = vsub.s32 %v987, %v989
    %v991 = vrot.slane %v975, %v990
    %v993 = vunpack.c.l.s4 1966171168
    %v994 = vunpack.c.0.s8 %v993
    %v995 = vlaneseq
    %v996 = vshrl.u32 %v995, 7
    %v997 = vsub.s32 %v994, %v996
    %v998 = vrot.slane %v982, %v997
    %v1000 = vunpack.c.l.s4 1966171168
    %v1001 = vunpack.c.0.s8 %v1000
    %v1002 = vlaneseq
    %v1003 = vshrl.u32 %v1002, 7
    %v1004 = vsub.s32 %v1001, %v1003
    %v1005 = vrot.slane %v983, %v1004
    %v1007 = vunpack.c.l.s4 1966171168
    %v1008 = vunpack.c.0.s8 %v1007
    %v1009 = vlaneseq
    %v1010 = vshrl.u32 %v1009, 7
    %v1011 = vsub.s32 %v1008, %v1010
    %v1012 = vrot.slane %v984, %v1011
    %v1013 = vcombine.high %v991, %v991
    %v1014 = vcombine.high %v998, %v998
    %v1015 = vcombine.high %v1005, %v1005
    %v1016 = vcombine.high %v1012, %v1012
    %v1017 = vlaneseq
    %v1018 = vshrl.u32 %v1017, 7
    %v1019 = vsub.s32 0, %v1018
    %v1020 = vrot.slane %v991, %v1019
    %v1021 = vlaneseq
    %v1022 = vshrl.u32 %v1021, 7
    %v1023 = vsub.s32 0, %v1022
    %v1024 = vrot.slane %v1005, %v1023
    %v1025 = vlaneseq
    %v1026 = vshrl.u32 %v1025, 7
    %v1027 = vsub.s32 0, %v1026
    %v1028 = vrot.slane %v1013, %v1027
    %v1029 = vlaneseq
    %v1030 = vshrl.u32 %v1029, 7
    %v1031 = vsub.s32 0, %v1030
    %v1032 = vrot.slane %v1015, %v1031
    %v1033 = vlaneseq
    %v1034 = vshrl.u32 %v1033, 7
    %v1035 = vsub.s32 0, %v1034
    %v1036 = vrot.slane %v998, %v1035
    %v1037 = vlaneseq
    %v1038 = vshrl.u32 %v1037, 7
    %v1039 = vsub.s32 0, %v1038
    %v1040 = vrot.slane %v1012, %v1039
    %v1041 = vlaneseq
    %v1042 = vshrl.u32 %v1041, 7
    %v1043 = vsub.s32 0, %v1042
    %v1044 = vrot.slane %v1014, %v1043
    %v1045 = vlaneseq
    %v1046 = vshrl.u32 %v1045, 7
    %v1047 = vsub.s32 0, %v1046
    %v1048 = vrot.slane %v1016, %v1047
    %v1057 = vadd.f32 %v885, %v1020
    %v1058 = vadd.f32 %v890, %v1020
    %v1059 = vadd.f32 %v885, %v1024
    %v1060 = vadd.f32 %v890, %v1024
    %v1061 = vadd.f32 %v885, %v1028
    %v1062 = vadd.f32 %v890, %v1028
    %v1063 = vadd.f32 %v885, %v1032
    %v1064 = vadd.f32 %v890, %v1032
    %v1065 = vadd.f32 %v885, %v1036
    %v1066 = vadd.f32 %v890, %v1036
    %v1067 = vadd.f32 %v885, %v1040
    %v1068 = vadd.f32 %v890, %v1040
    %v1069 = vadd.f32 %v885, %v1044
    %v1070 = vadd.f32 %v890, %v1044
    %v1071 = vadd.f32 %v885, %v1048
    %v1072 = vadd.f32 %v890, %v1048
    %vm1073 = vcmp.ge.f32.partialorder %v1057, 0.0
    %vm1074 = vcmp.ge.f32.partialorder %v1058, 0.0
    %vm1075 = vcmp.ge.f32.partialorder %v1059, 0.0
    %vm1076 = vcmp.ge.f32.partialorder %v1060, 0.0
    %vm1077 = vcmp.ge.f32.partialorder %v1061, 0.0
    %vm1078 = vcmp.ge.f32.partialorder %v1062, 0.0
    %vm1079 = vcmp.ge.f32.partialorder %v1063, 0.0
    %vm1080 = vcmp.ge.f32.partialorder %v1064, 0.0
    %vm1081 = vcmp.ge.f32.partialorder %v1065, 0.0
    %vm1082 = vcmp.ge.f32.partialorder %v1066, 0.0
    %vm1083 = vcmp.ge.f32.partialorder %v1067, 0.0
    %vm1084 = vcmp.ge.f32.partialorder %v1068, 0.0
    %vm1085 = vcmp.ge.f32.partialorder %v1069, 0.0
    %vm1086 = vcmp.ge.f32.partialorder %v1070, 0.0
    %vm1087 = vcmp.ge.f32.partialorder %v1071, 0.0
    %vm1088 = vcmp.ge.f32.partialorder %v1072, 0.0
    %v1089 = vmul.f32 %v1057, 0.2
    %v1090 = vmul.f32 %v1058, 0.2
    %v1091 = vmul.f32 %v1059, 0.2
    %v1092 = vmul.f32 %v1060, 0.2
    %v1093 = vmul.f32 %v1061, 0.2
    %v1094 = vmul.f32 %v1062, 0.2
    %v1095 = vmul.f32 %v1063, 0.2
    %v1096 = vmul.f32 %v1064, 0.2
    %v1097 = vmul.f32 %v1065, 0.2
    %v1098 = vmul.f32 %v1066, 0.2
    %v1099 = vmul.f32 %v1067, 0.2
    %v1100 = vmul.f32 %v1068, 0.2
    %v1101 = vmul.f32 %v1069, 0.2
    %v1102 = vmul.f32 %v1070, 0.2
    %v1103 = vmul.f32 %v1071, 0.2
    %v1104 = vmul.f32 %v1072, 0.2
    %v1105 = vsel %vm1073, %v1057, %v1089
    %v1106 = vsel %vm1074, %v1058, %v1090
    %v1107 = vsel %vm1075, %v1059, %v1091
    %v1108 = vsel %vm1076, %v1060, %v1092
    %v1109 = vsel %vm1077, %v1061, %v1093
    %v1110 = vsel %vm1078, %v1062, %v1094
    %v1111 = vsel %vm1079, %v1063, %v1095
    %v1112 = vsel %vm1080, %v1064, %v1096
    %v1113 = vsel %vm1081, %v1065, %v1097
    %v1114 = vsel %vm1082, %v1066, %v1098
    %v1115 = vsel %vm1083, %v1067, %v1099
    %v1116 = vsel %vm1084, %v1068, %v1100
    %v1117 = vsel %vm1085, %v1069, %v1101
    %v1118 = vsel %vm1086, %v1070, %v1102
    %v1119 = vsel %vm1087, %v1071, %v1103
    %v1120 = vsel %vm1088, %v1072, %v1104
    %v1121 = vlaneseq
    %v1122 = vshrl.u32 %v1121, 7
    %v1123 = vsub.s32 5, %v1122
    %v1124 = vrot.slane %v79, %v1123
    %v1125 = vmul.f32 %v1105, %v1124
    %v1126 = vmul.f32 %v1106, %v1124
    %v1127 = vmul.f32 %v1107, %v1124
    %v1128 = vmul.f32 %v1108, %v1124
    %v1129 = vmul.f32 %v1109, %v1124
    %v1130 = vmul.f32 %v1110, %v1124
    %v1131 = vmul.f32 %v1111, %v1124
    %v1132 = vmul.f32 %v1112, %v1124
    %v1133 = vmul.f32 %v1113, %v1124
    %v1134 = vmul.f32 %v1114, %v1124
    %v1135 = vmul.f32 %v1115, %v1124
    %v1136 = vmul.f32 %v1116, %v1124
    %v1137 = vmul.f32 %v1117, %v1124
    %v1138 = vmul.f32 %v1118, %v1124
    %v1139 = vmul.f32 %v1119, %v1124
    %v1140 = vmul.f32 %v1120, %v1124
    %1141 = vadd.xlane.f32.xlu0 %v1125
    %v1142 = vpop.xlane.xlu0 %1141
    %1143 = vadd.xlane.f32.xlu0 %v1126
    %v1144 = vpop.xlane.xlu0 %1143
    %1145 = vadd.xlane.f32.xlu0 %v1127
    %v1146 = vpop.xlane.xlu0 %1145
    %1147 = vadd.xlane.f32.xlu0 %v1128
    %v1148 = vpop.xlane.xlu0 %1147
    %1149 = vadd.xlane.f32.xlu0 %v1129
    %v1150 = vpop.xlane.xlu0 %1149
    %1151 = vadd.xlane.f32.xlu0 %v1130
    %v1152 = vpop.xlane.xlu0 %1151
    %1153 = vadd.xlane.f32.xlu0 %v1131
    %v1154 = vpop.xlane.xlu0 %1153
    %1155 = vadd.xlane.f32.xlu0 %v1132
    %v1156 = vpop.xlane.xlu0 %1155
    %1157 = vadd.xlane.f32.xlu0 %v1133
    %v1158 = vpop.xlane.xlu0 %1157
    %1159 = vadd.xlane.f32.xlu0 %v1134
    %v1160 = vpop.xlane.xlu0 %1159
    %1161 = vadd.xlane.f32.xlu0 %v1135
    %v1162 = vpop.xlane.xlu0 %1161
    %1163 = vadd.xlane.f32.xlu0 %v1136
    %v1164 = vpop.xlane.xlu0 %1163
    %1165 = vadd.xlane.f32.xlu0 %v1137
    %v1166 = vpop.xlane.xlu0 %1165
    %1167 = vadd.xlane.f32.xlu0 %v1138
    %v1168 = vpop.xlane.xlu0 %1167
    %1169 = vadd.xlane.f32.xlu0 %v1139
    %v1170 = vpop.xlane.xlu0 %1169
    %1171 = vadd.xlane.f32.xlu0 %v1140
    %v1172 = vpop.xlane.xlu0 %1171
    %vm1173 = vcmp.gt.f32.partialorder %v83, 0.5
    %v1190 = vlaneseq
    %v1191 = vshrl.u32 %v1190, 7
    %v1192 = vsub.s32 %v586, %v1191
    %v1193 = vrot.slane %v1142, %v1192
    %v1194 = vadd.s32 %v586, 4294967288
    %v1195 = vlaneseq
    %v1196 = vshrl.u32 %v1195, 7
    %v1197 = vsub.s32 %v1194, %v1196
    %v1198 = vrot.slane %v1144, %v1197
    %vm1199 = vcmask 130112
    %v1200 = vsel %vm1199, %v1198, %v1193
    %v1201 = vlaneseq
    %v1202 = vshrl.u32 %v1201, 7
    %v1203 = vsub.s32 %v586, %v1202
    %v1204 = vrot.slane %v1146, %v1203
    %v1205 = vlaneseq
    %v1206 = vshrl.u32 %v1205, 7
    %v1207 = vsub.s32 %v1194, %v1206
    %v1208 = vrot.slane %v1148, %v1207
    %v1209 = vsel %vm1199, %v1208, %v1204
    %v1210 = vlaneseq
    %v1211 = vshrl.u32 %v1210, 7
    %v1212 = vsub.s32 %v586, %v1211
    %v1213 = vrot.slane %v1150, %v1212
    %v1214 = vlaneseq
    %v1215 = vshrl.u32 %v1214, 7
    %v1216 = vsub.s32 %v1194, %v1215
    %v1217 = vrot.slane %v1152, %v1216
    %v1218 = vsel %vm1199, %v1217, %v1213
    %v1219 = vlaneseq
    %v1220 = vshrl.u32 %v1219, 7
    %v1221 = vsub.s32 %v586, %v1220
    %v1222 = vrot.slane %v1154, %v1221
    %v1223 = vlaneseq
    %v1224 = vshrl.u32 %v1223, 7
    %v1225 = vsub.s32 %v1194, %v1224
    %v1226 = vrot.slane %v1156, %v1225
    %v1227 = vsel %vm1199, %v1226, %v1222
    %v1228 = vlaneseq
    %v1229 = vshrl.u32 %v1228, 7
    %v1230 = vsub.s32 %v586, %v1229
    %v1231 = vrot.slane %v1158, %v1230
    %v1232 = vlaneseq
    %v1233 = vshrl.u32 %v1232, 7
    %v1234 = vsub.s32 %v1194, %v1233
    %v1235 = vrot.slane %v1160, %v1234
    %v1236 = vsel %vm1199, %v1235, %v1231
    %v1237 = vlaneseq
    %v1238 = vshrl.u32 %v1237, 7
    %v1239 = vsub.s32 %v586, %v1238
    %v1240 = vrot.slane %v1162, %v1239
    %v1241 = vlaneseq
    %v1242 = vshrl.u32 %v1241, 7
    %v1243 = vsub.s32 %v1194, %v1242
    %v1244 = vrot.slane %v1164, %v1243
    %v1245 = vsel %vm1199, %v1244, %v1240
    %v1246 = vlaneseq
    %v1247 = vshrl.u32 %v1246, 7
    %v1248 = vsub.s32 %v586, %v1247
    %v1249 = vrot.slane %v1166, %v1248
    %v1250 = vlaneseq
    %v1251 = vshrl.u32 %v1250, 7
    %v1252 = vsub.s32 %v1194, %v1251
    %v1253 = vrot.slane %v1168, %v1252
    %v1254 = vsel %vm1199, %v1253, %v1249
    %v1255 = vlaneseq
    %v1256 = vshrl.u32 %v1255, 7
    %v1257 = vsub.s32 %v586, %v1256
    %v1258 = vrot.slane %v1170, %v1257
    %v1259 = vlaneseq
    %v1260 = vshrl.u32 %v1259, 7
    %v1261 = vsub.s32 %v1194, %v1260
    %v1262 = vrot.slane %v1172, %v1261
    %v1263 = vsel %vm1199, %v1262, %v1258
    %v1264 = vsel %vm651, %v1209, %v1200
    %v1265 = vsel %vm653, %v1218, %v1264
    %v1266 = vsel %vm655, %v1227, %v1265
    %v1267 = vsel %vm657, %v1236, %v1266
    %v1268 = vsel %vm659, %v1245, %v1267
    %v1269 = vsel %vm661, %v1254, %v1268
    %v1270 = vsel %vm663, %v1263, %v1269
    %v1272 = vsel %vm1173, %v1270, -1e+30
    %vm1273 = vcmask 130048
    %v1274 = vsel %vm1273, %v1272, -inf
    %1275 = vmax.xlane.f32.xlu0 %v1274
    %v1276 = vpop.xlane.xlu0 %1275
    %v1277 = vsub.f32 %v1272, %v1276
    %v1278 = vmul.f32 %v1277, 1.442695
    %v1279 = vpow.pop %v1278
    %v1280 = vsel %vm1273, %v1279, 0.0
    %1281 = vadd.xlane.f32.xlu0 %v1280
    %v1282 = vpop.xlane.xlu0 %1281
    %v1283 = vrcp.pop %v1282
    %v1284 = vmul.f32 %v1279, %v1283
    %v1286 = vsel %vm1273, %v1284, 0
    %1288 = vmatprep.subr.mxu0 0.0
    %1289 = vmatpush1.msra.mxu0 %v885
    %1290 = vmatprep.subr.mxu0 0.0
    %1291 = vmatpush1.msra.mxu0 %v890
    %1292 = vmatprep.subr.mxu0 0.0
    %1293 = vmatpush1.msra.mxu0 0.0
    %1294 = vmatprep.subr.mxu0 0.0
    %1295 = vmatpush1.msra.mxu0 0.0
    %1296 = vmatprep.subr.mxu0 0.0
    %1297 = vmatpush1.msra.mxu0 0.0
    %1298 = vmatprep.subr.mxu0 0.0
    %1299 = vmatpush1.msra.mxu0 0.0
    %1300 = vmatprep.subr.mxu0 0.0
    %1301 = vmatpush1.msra.mxu0 0.0
    %1302 = vmatprep.subr.mxu0 0.0
    %1303 = vmatpush1.msra.mxu0 0.0
    %1304 = vmatprep.subr.mxu0 0.0
    %1305 = vmatpush1.msra.mxu0 0.0
    %1306 = vmatprep.subr.mxu0 0.0
    %1307 = vmatpush1.msra.mxu0 0.0
    %1308 = vmatprep.subr.mxu0 0.0
    %1309 = vmatpush1.msra.mxu0 0.0
    %1310 = vmatprep.subr.mxu0 0.0
    %1311 = vmatpush1.msra.mxu0 0.0
    %1312 = vmatprep.subr.mxu0 0.0
    %1313 = vmatpush1.msra.mxu0 0.0
    %1314 = vmatprep.subr.mxu0 0.0
    %1315 = vmatpush1.msra.mxu0 0.0
    %1316 = vmatprep.subr.mxu0 0.0
    %1317 = vmatpush1.msra.mxu0 0.0
    %1318 = vmatprep.subr.mxu0 0.0
    %1319 = vmatpush1.msra.mxu0 0.0
    %1320 = vmatprep.subr.mxu0 0.0
    %1321 = vmatpush1.msra.mxu0 0.0
    %1322 = vmatprep.subr.mxu0 0.0
    %1323 = vmatpush1.msra.mxu0 0.0
    %1324 = vmatprep.subr.mxu0 0.0
    %1325 = vmatpush1.msra.mxu0 0.0
    %1326 = vmatprep.subr.mxu0 0.0
    %1327 = vmatpush1.msra.mxu0 0.0
    %1328 = vmatprep.subr.mxu0 0.0
    %1329 = vmatpush1.msra.mxu0 0.0
    %1330 = vmatprep.subr.mxu0 0.0
    %1331 = vmatpush1.msra.mxu0 0.0
    %1332 = vmatprep.subr.mxu0 0.0
    %1333 = vmatpush1.msra.mxu0 0.0
    %1334 = vmatprep.subr.mxu0 0.0
    %1335 = vmatpush1.msra.mxu0 0.0
    %1336 = vmatprep.subr.mxu0 0.0
    %1337 = vmatpush1.msra.mxu0 0.0
    %1338 = vmatprep.subr.mxu0 0.0
    %1339 = vmatpush1.msra.mxu0 0.0
    %1340 = vmatprep.subr.mxu0 0.0
    %1341 = vmatpush1.msra.mxu0 0.0
    %1342 = vmatprep.subr.mxu0 0.0
    %1343 = vmatpush1.msra.mxu0 0.0
    %1344 = vmatprep.subr.mxu0 0.0
    %1345 = vmatpush1.msra.mxu0 0.0
    %1346 = vmatprep.subr.mxu0 0.0
    %1347 = vmatpush1.msra.mxu0 0.0
    %1348 = vmatprep.subr.mxu0 0.0
    %1349 = vmatpush1.msra.mxu0 0.0
    %1350 = vmatprep.subr.mxu0 0.0
    %1351 = vmatpush1.msra.mxu0 0.0
    %1352 = vmatprep.mubr.f32.mxu0 0.0
    %1353 = vmatmul.mubr.f32.gmra.mrb[0].mxu0 %v1286
    %v1354 = vpop.f32.mrb[0].mxu0
    %v1355 = vadd.f32 0.0, %v1354
    %v1356 = vpop.f32.mrb[0].mxu0
    %1357 = vdwg.mxu0
    %s1358 = scalar_lea.vmem [#allocation8], 512
    %v1359 = vld [vmem:[%s1358] sm:$0xff]
    %v1360 = vld [vmem:[%s1358 + $0x8] sm:$0xff]
    %v1361 = vld [vmem:[%s1358 + $0x10] sm:$0xff]
    %v1362 = vld [vmem:[%s1358 + $0x18] sm:$0xff]
    %v1363 = vld [vmem:[%s1358 + $0x20] sm:$0xff]
    %v1364 = vld [vmem:[%s1358 + $0x28] sm:$0xff]
    %v1365 = vld [vmem:[%s1358 + $0x30] sm:$0xff]
    %v1366 = vld [vmem:[%s1358 + $0x38] sm:$0xff]
    %v1367 = vld [vmem:[%s1358 + $0x40] sm:$0xff]
    %v1368 = vld [vmem:[%s1358 + $0x48] sm:$0xff]
    %v1369 = vld [vmem:[%s1358 + $0x50] sm:$0xff]
    %v1370 = vld [vmem:[%s1358 + $0x58] sm:$0xff]
    %v1371 = vld [vmem:[%s1358 + $0x60] sm:$0xff]
    %v1372 = vld [vmem:[%s1358 + $0x68] sm:$0xff]
    %v1373 = vld [vmem:[%s1358 + $0x70] sm:$0xff]
    %v1374 = vld [vmem:[%s1358 + $0x78] sm:$0xff]
    %s1375 = scalar_lea.vmem [#allocation8], 640
    %v1376 = vld [vmem:[%s1375] sm:$0xff]
    %v1377 = vld [vmem:[%s1375 + $0x8] sm:$0xff]
    %v1378 = vld [vmem:[%s1375 + $0x10] sm:$0xff]
    %v1379 = vld [vmem:[%s1375 + $0x18] sm:$0xff]
    %v1380 = vld [vmem:[%s1375 + $0x20] sm:$0xff]
    %v1381 = vld [vmem:[%s1375 + $0x28] sm:$0xff]
    %v1382 = vld [vmem:[%s1375 + $0x30] sm:$0xff]
    %v1383 = vld [vmem:[%s1375 + $0x38] sm:$0xff]
    %v1384 = vld [vmem:[%s1375 + $0x40] sm:$0xff]
    %v1385 = vld [vmem:[%s1375 + $0x48] sm:$0xff]
    %v1386 = vld [vmem:[%s1375 + $0x50] sm:$0xff]
    %v1387 = vld [vmem:[%s1375 + $0x58] sm:$0xff]
    %v1388 = vld [vmem:[%s1375 + $0x60] sm:$0xff]
    %v1389 = vld [vmem:[%s1375 + $0x68] sm:$0xff]
    %v1390 = vld [vmem:[%s1375 + $0x70] sm:$0xff]
    %v1391 = vld [vmem:[%s1375 + $0x78] sm:$0xff]
    %v1392 = vlaneseq
    %v1393 = vshrl.u32 %v1392, 7
    %v1394 = vsub.s32 6, %v1393
    %v1395 = vrot.slane %v79, %v1394
    %1396 = vmatprep.subr.mxu0 0.0
    %1397 = vmatpush1.msra.mxu0 %v1359
    %1398 = vmatprep.subr.mxu0 0.0
    %1399 = vmatpush1.msra.mxu0 %v1360
    %1400 = vmatprep.subr.mxu0 0.0
    %1401 = vmatpush1.msra.mxu0 %v1361
    %1402 = vmatprep.subr.mxu0 0.0
    %1403 = vmatpush1.msra.mxu0 %v1362
    %1404 = vmatprep.subr.mxu0 0.0
    %1405 = vmatpush1.msra.mxu0 %v1363
    %1406 = vmatprep.subr.mxu0 0.0
    %1407 = vmatpush1.msra.mxu0 %v1364
    %1408 = vmatprep.subr.mxu0 0.0
    %1409 = vmatpush1.msra.mxu0 %v1365
    %1410 = vmatprep.subr.mxu0 0.0
    %1411 = vmatpush1.msra.mxu0 %v1366
    %1412 = vmatprep.subr.mxu0 0.0
    %1413 = vmatpush1.msra.mxu0 %v1367
    %1414 = vmatprep.subr.mxu0 0.0
    %1415 = vmatpush1.msra.mxu0 %v1368
    %1416 = vmatprep.subr.mxu0 0.0
    %1417 = vmatpush1.msra.mxu0 %v1369
    %1418 = vmatprep.subr.mxu0 0.0
    %1419 = vmatpush1.msra.mxu0 %v1370
    %1420 = vmatprep.subr.mxu0 0.0
    %1421 = vmatpush1.msra.mxu0 %v1371
    %1422 = vmatprep.subr.mxu0 0.0
    %1423 = vmatpush1.msra.mxu0 %v1372
    %1424 = vmatprep.subr.mxu0 0.0
    %1425 = vmatpush1.msra.mxu0 %v1373
    %1426 = vmatprep.subr.mxu0 0.0
    %1427 = vmatpush1.msra.mxu0 %v1374
    %1428 = vmatprep.subr.mxu0 0.0
    %1429 = vmatpush1.msra.mxu0 0.0
    %1430 = vmatprep.subr.mxu0 0.0
    %1431 = vmatpush1.msra.mxu0 0.0
    %1432 = vmatprep.subr.mxu0 0.0
    %1433 = vmatpush1.msra.mxu0 0.0
    %1434 = vmatprep.subr.mxu0 0.0
    %1435 = vmatpush1.msra.mxu0 0.0
    %1436 = vmatprep.subr.mxu0 0.0
    %1437 = vmatpush1.msra.mxu0 0.0
    %1438 = vmatprep.subr.mxu0 0.0
    %1439 = vmatpush1.msra.mxu0 0.0
    %1440 = vmatprep.subr.mxu0 0.0
    %1441 = vmatpush1.msra.mxu0 0.0
    %1442 = vmatprep.subr.mxu0 0.0
    %1443 = vmatpush1.msra.mxu0 0.0
    %1444 = vmatprep.subr.mxu0 0.0
    %1445 = vmatpush1.msra.mxu0 0.0
    %1446 = vmatprep.subr.mxu0 0.0
    %1447 = vmatpush1.msra.mxu0 0.0
    %1448 = vmatprep.subr.mxu0 0.0
    %1449 = vmatpush1.msra.mxu0 0.0
    %1450 = vmatprep.subr.mxu0 0.0
    %1451 = vmatpush1.msra.mxu0 0.0
    %1452 = vmatprep.subr.mxu0 0.0
    %1453 = vmatpush1.msra.mxu0 0.0
    %1454 = vmatprep.subr.mxu0 0.0
    %1455 = vmatpush1.msra.mxu0 0.0
    %1456 = vmatprep.subr.mxu0 0.0
    %1457 = vmatpush1.msra.mxu0 0.0
    %1458 = vmatprep.subr.mxu0 0.0
    %1459 = vmatpush1.msra.mxu0 0.0
    %1460 = vmatprep.mubr.f32.mxu0 0.0
    %1461 = vmatmul.mubr.f32.gmra.mrb[0].mxu0 %v772
    %v1462 = vpop.f32.mrb[0].mxu0
    %v1463 = vadd.f32 %v1395, %v1462
    %v1464 = vpop.f32.mrb[0].mxu0
    %1465 = vmatprep.mubr.f32.mxu0 0.0
    %1466 = vmatmul.mubr.f32.gmra.mrb[0].mxu0 %v777
    %v1467 = vpop.f32.mrb[0].mxu0
    %v1468 = vadd.f32 %v1395, %v1467
    %v1469 = vpop.f32.mrb[0].mxu0
    %1470 = vdwg.mxu0
    %v1471 = vlaneseq
    %v1472 = vshrl.u32 %v1471, 7
    %v1473 = vsub.s32 7, %v1472
    %v1474 = vrot.slane %v79, %v1473
    %1475 = vmatprep.subr.mxu0 0.0
    %1476 = vmatpush1.msra.mxu0 %v1376
    %1477 = vmatprep.subr.mxu0 0.0
    %1478 = vmatpush1.msra.mxu0 %v1377
    %1479 = vmatprep.subr.mxu0 0.0
    %1480 = vmatpush1.msra.mxu0 %v1378
    %1481 = vmatprep.subr.mxu0 0.0
    %1482 = vmatpush1.msra.mxu0 %v1379
    %1483 = vmatprep.subr.mxu0 0.0
    %1484 = vmatpush1.msra.mxu0 %v1380
    %1485 = vmatprep.subr.mxu0 0.0
    %1486 = vmatpush1.msra.mxu0 %v1381
    %1487 = vmatprep.subr.mxu0 0.0
    %1488 = vmatpush1.msra.mxu0 %v1382
    %1489 = vmatprep.subr.mxu0 0.0
    %1490 = vmatpush1.msra.mxu0 %v1383
    %1491 = vmatprep.subr.mxu0 0.0
    %1492 = vmatpush1.msra.mxu0 %v1384
    %1493 = vmatprep.subr.mxu0 0.0
    %1494 = vmatpush1.msra.mxu0 %v1385
    %1495 = vmatprep.subr.mxu0 0.0
    %1496 = vmatpush1.msra.mxu0 %v1386
    %1497 = vmatprep.subr.mxu0 0.0
    %1498 = vmatpush1.msra.mxu0 %v1387
    %1499 = vmatprep.subr.mxu0 0.0
    %1500 = vmatpush1.msra.mxu0 %v1388
    %1501 = vmatprep.subr.mxu0 0.0
    %1502 = vmatpush1.msra.mxu0 %v1389
    %1503 = vmatprep.subr.mxu0 0.0
    %1504 = vmatpush1.msra.mxu0 %v1390
    %1505 = vmatprep.subr.mxu0 0.0
    %1506 = vmatpush1.msra.mxu0 %v1391
    %1507 = vmatprep.subr.mxu0 0.0
    %1508 = vmatpush1.msra.mxu0 0.0
    %1509 = vmatprep.subr.mxu0 0.0
    %1510 = vmatpush1.msra.mxu0 0.0
    %1511 = vmatprep.subr.mxu0 0.0
    %1512 = vmatpush1.msra.mxu0 0.0
    %1513 = vmatprep.subr.mxu0 0.0
    %1514 = vmatpush1.msra.mxu0 0.0
    %1515 = vmatprep.subr.mxu0 0.0
    %1516 = vmatpush1.msra.mxu0 0.0
    %1517 = vmatprep.subr.mxu0 0.0
    %1518 = vmatpush1.msra.mxu0 0.0
    %1519 = vmatprep.subr.mxu0 0.0
    %1520 = vmatpush1.msra.mxu0 0.0
    %1521 = vmatprep.subr.mxu0 0.0
    %1522 = vmatpush1.msra.mxu0 0.0
    %1523 = vmatprep.subr.mxu0 0.0
    %1524 = vmatpush1.msra.mxu0 0.0
    %1525 = vmatprep.subr.mxu0 0.0
    %1526 = vmatpush1.msra.mxu0 0.0
    %1527 = vmatprep.subr.mxu0 0.0
    %1528 = vmatpush1.msra.mxu0 0.0
    %1529 = vmatprep.subr.mxu0 0.0
    %1530 = vmatpush1.msra.mxu0 0.0
    %1531 = vmatprep.subr.mxu0 0.0
    %1532 = vmatpush1.msra.mxu0 0.0
    %1533 = vmatprep.subr.mxu0 0.0
    %1534 = vmatpush1.msra.mxu0 0.0
    %1535 = vmatprep.subr.mxu0 0.0
    %1536 = vmatpush1.msra.mxu0 0.0
    %1537 = vmatprep.subr.mxu0 0.0
    %1538 = vmatpush1.msra.mxu0 0.0
    %1539 = vmatprep.mubr.f32.mxu0 0.0
    %1540 = vmatmul.mubr.f32.gmra.mrb[0].mxu0 %v76
    %v1541 = vpop.f32.mrb[0].mxu0
    %v1542 = vadd.f32 %v1474, %v1541
    %v1543 = vpop.f32.mrb[0].mxu0
    %1544 = vdwg.mxu0
    %v1546 = vcombine.high %v1542, %v1542
    %v1548 = vunpack.c.l.s4 1966171168
    %v1549 = vunpack.c.0.s8 %v1548
    %v1550 = vlaneseq
    %v1551 = vshrl.u32 %v1550, 7
    %v1552 = vsub.s32 %v1549, %v1551
    %v1553 = vrot.slane %v1542, %v1552
    %v1555 = vunpack.c.l.s4 1966171168
    %v1556 = vunpack.c.0.s8 %v1555
    %v1557 = vlaneseq
    %v1558 = vshrl.u32 %v1557, 7
    %v1559 = vsub.s32 %v1556, %v1558
    %v1560 = vrot.slane %v1546, %v1559
    %v1561 = vcombine.high %v1553, %v1553
    %v1562 = vcombine.high %v1560, %v1560
    %v1564 = vunpack.c.l.s4 1966171168
    %v1565 = vunpack.c.0.s8 %v1564
    %v1566 = vlaneseq
    %v1567 = vshrl.u32 %v1566, 7
    %v1568 = vsub.s32 %v1565, %v1567
    %v1569 = vrot.slane %v1553, %v1568
    %v1571 = vunpack.c.l.s4 1966171168
    %v1572 = vunpack.c.0.s8 %v1571
    %v1573 = vlaneseq
    %v1574 = vshrl.u32 %v1573, 7
    %v1575 = vsub.s32 %v1572, %v1574
    %v1576 = vrot.slane %v1560, %v1575
    %v1578 = vunpack.c.l.s4 1966171168
    %v1579 = vunpack.c.0.s8 %v1578
    %v1580 = vlaneseq
    %v1581 = vshrl.u32 %v1580, 7
    %v1582 = vsub.s32 %v1579, %v1581
    %v1583 = vrot.slane %v1561, %v1582
    %v1585 = vunpack.c.l.s4 1966171168
    %v1586 = vunpack.c.0.s8 %v1585
    %v1587 = vlaneseq
    %v1588 = vshrl.u32 %v1587, 7
    %v1589 = vsub.s32 %v1586, %v1588
    %v1590 = vrot.slane %v1562, %v1589
    %v1591 = vcombine.high %v1569, %v1569
    %v1592 = vcombine.high %v1576, %v1576
    %v1593 = vcombine.high %v1583, %v1583
    %v1594 = vcombine.high %v1590, %v1590
    %v1595 = vlaneseq
    %v1596 = vshrl.u32 %v1595, 7
    %v1597 = vsub.s32 0, %v1596
    %v1598 = vrot.slane %v1569, %v1597
    %v1599 = vlaneseq
    %v1600 = vshrl.u32 %v1599, 7
    %v1601 = vsub.s32 0, %v1600
    %v1602 = vrot.slane %v1583, %v1601
    %v1603 = vlaneseq
    %v1604 = vshrl.u32 %v1603, 7
    %v1605 = vsub.s32 0, %v1604
    %v1606 = vrot.slane %v1591, %v1605
    %v1607 = vlaneseq
    %v1608 = vshrl.u32 %v1607, 7
    %v1609 = vsub.s32 0, %v1608
    %v1610 = vrot.slane %v1593, %v1609
    %v1611 = vlaneseq
    %v1612 = vshrl.u32 %v1611, 7
    %v1613 = vsub.s32 0, %v1612
    %v1614 = vrot.slane %v1576, %v1613
    %v1615 = vlaneseq
    %v1616 = vshrl.u32 %v1615, 7
    %v1617 = vsub.s32 0, %v1616
    %v1618 = vrot.slane %v1590, %v1617
    %v1619 = vlaneseq
    %v1620 = vshrl.u32 %v1619, 7
    %v1621 = vsub.s32 0, %v1620
    %v1622 = vrot.slane %v1592, %v1621
    %v1623 = vlaneseq
    %v1624 = vshrl.u32 %v1623, 7
    %v1625 = vsub.s32 0, %v1624
    %v1626 = vrot.slane %v1594, %v1625
    %v1635 = vadd.f32 %v1463, %v1598
    %v1636 = vadd.f32 %v1468, %v1598
    %v1637 = vadd.f32 %v1463, %v1602
    %v1638 = vadd.f32 %v1468, %v1602
    %v1639 = vadd.f32 %v1463, %v1606
    %v1640 = vadd.f32 %v1468, %v1606
    %v1641 = vadd.f32 %v1463, %v1610
    %v1642 = vadd.f32 %v1468, %v1610
    %v1643 = vadd.f32 %v1463, %v1614
    %v1644 = vadd.f32 %v1468, %v1614
    %v1645 = vadd.f32 %v1463, %v1618
    %v1646 = vadd.f32 %v1468, %v1618
    %v1647 = vadd.f32 %v1463, %v1622
    %v1648 = vadd.f32 %v1468, %v1622
    %v1649 = vadd.f32 %v1463, %v1626
    %v1650 = vadd.f32 %v1468, %v1626
    %vm1651 = vcmp.ge.f32.partialorder %v1635, 0.0
    %vm1652 = vcmp.ge.f32.partialorder %v1636, 0.0
    %vm1653 = vcmp.ge.f32.partialorder %v1637, 0.0
    %vm1654 = vcmp.ge.f32.partialorder %v1638, 0.0
    %vm1655 = vcmp.ge.f32.partialorder %v1639, 0.0
    %vm1656 = vcmp.ge.f32.partialorder %v1640, 0.0
    %vm1657 = vcmp.ge.f32.partialorder %v1641, 0.0
    %vm1658 = vcmp.ge.f32.partialorder %v1642, 0.0
    %vm1659 = vcmp.ge.f32.partialorder %v1643, 0.0
    %vm1660 = vcmp.ge.f32.partialorder %v1644, 0.0
    %vm1661 = vcmp.ge.f32.partialorder %v1645, 0.0
    %vm1662 = vcmp.ge.f32.partialorder %v1646, 0.0
    %vm1663 = vcmp.ge.f32.partialorder %v1647, 0.0
    %vm1664 = vcmp.ge.f32.partialorder %v1648, 0.0
    %vm1665 = vcmp.ge.f32.partialorder %v1649, 0.0
    %vm1666 = vcmp.ge.f32.partialorder %v1650, 0.0
    %v1667 = vmul.f32 %v1635, 0.2
    %v1668 = vmul.f32 %v1636, 0.2
    %v1669 = vmul.f32 %v1637, 0.2
    %v1670 = vmul.f32 %v1638, 0.2
    %v1671 = vmul.f32 %v1639, 0.2
    %v1672 = vmul.f32 %v1640, 0.2
    %v1673 = vmul.f32 %v1641, 0.2
    %v1674 = vmul.f32 %v1642, 0.2
    %v1675 = vmul.f32 %v1643, 0.2
    %v1676 = vmul.f32 %v1644, 0.2
    %v1677 = vmul.f32 %v1645, 0.2
    %v1678 = vmul.f32 %v1646, 0.2
    %v1679 = vmul.f32 %v1647, 0.2
    %v1680 = vmul.f32 %v1648, 0.2
    %v1681 = vmul.f32 %v1649, 0.2
    %v1682 = vmul.f32 %v1650, 0.2
    %v1683 = vsel %vm1651, %v1635, %v1667
    %v1684 = vsel %vm1652, %v1636, %v1668
    %v1685 = vsel %vm1653, %v1637, %v1669
    %v1686 = vsel %vm1654, %v1638, %v1670
    %v1687 = vsel %vm1655, %v1639, %v1671
    %v1688 = vsel %vm1656, %v1640, %v1672
    %v1689 = vsel %vm1657, %v1641, %v1673
    %v1690 = vsel %vm1658, %v1642, %v1674
    %v1691 = vsel %vm1659, %v1643, %v1675
    %v1692 = vsel %vm1660, %v1644, %v1676
    %v1693 = vsel %vm1661, %v1645, %v1677
    %v1694 = vsel %vm1662, %v1646, %v1678
    %v1695 = vsel %vm1663, %v1647, %v1679
    %v1696 = vsel %vm1664, %v1648, %v1680
    %v1697 = vsel %vm1665, %v1649, %v1681
    %v1698 = vsel %vm1666, %v1650, %v1682
    %v1699 = vlaneseq
    %v1700 = vshrl.u32 %v1699, 7
    %v1701 = vsub.s32 0, %v1700
    %v1702 = vrot.slane %v80, %v1701
    %v1703 = vmul.f32 %v1683, %v1702
    %v1704 = vmul.f32 %v1684, %v1702
    %v1705 = vmul.f32 %v1685, %v1702
    %v1706 = vmul.f32 %v1686, %v1702
    %v1707 = vmul.f32 %v1687, %v1702
    %v1708 = vmul.f32 %v1688, %v1702
    %v1709 = vmul.f32 %v1689, %v1702
    %v1710 = vmul.f32 %v1690, %v1702
    %v1711 = vmul.f32 %v1691, %v1702
    %v1712 = vmul.f32 %v1692, %v1702
    %v1713 = vmul.f32 %v1693, %v1702
    %v1714 = vmul.f32 %v1694, %v1702
    %v1715 = vmul.f32 %v1695, %v1702
    %v1716 = vmul.f32 %v1696, %v1702
    %v1717 = vmul.f32 %v1697, %v1702
    %v1718 = vmul.f32 %v1698, %v1702
    %1719 = vadd.xlane.f32.xlu0 %v1703
    %v1720 = vpop.xlane.xlu0 %1719
    %1721 = vadd.xlane.f32.xlu0 %v1704
    %v1722 = vpop.xlane.xlu0 %1721
    %1723 = vadd.xlane.f32.xlu0 %v1705
    %v1724 = vpop.xlane.xlu0 %1723
    %1725 = vadd.xlane.f32.xlu0 %v1706
    %v1726 = vpop.xlane.xlu0 %1725
    %1727 = vadd.xlane.f32.xlu0 %v1707
    %v1728 = vpop.xlane.xlu0 %1727
    %1729 = vadd.xlane.f32.xlu0 %v1708
    %v1730 = vpop.xlane.xlu0 %1729
    %1731 = vadd.xlane.f32.xlu0 %v1709
    %v1732 = vpop.xlane.xlu0 %1731
    %1733 = vadd.xlane.f32.xlu0 %v1710
    %v1734 = vpop.xlane.xlu0 %1733
    %1735 = vadd.xlane.f32.xlu0 %v1711
    %v1736 = vpop.xlane.xlu0 %1735
    %1737 = vadd.xlane.f32.xlu0 %v1712
    %v1738 = vpop.xlane.xlu0 %1737
    %1739 = vadd.xlane.f32.xlu0 %v1713
    %v1740 = vpop.xlane.xlu0 %1739
    %1741 = vadd.xlane.f32.xlu0 %v1714
    %v1742 = vpop.xlane.xlu0 %1741
    %1743 = vadd.xlane.f32.xlu0 %v1715
    %v1744 = vpop.xlane.xlu0 %1743
    %1745 = vadd.xlane.f32.xlu0 %v1716
    %v1746 = vpop.xlane.xlu0 %1745
    %1747 = vadd.xlane.f32.xlu0 %v1717
    %v1748 = vpop.xlane.xlu0 %1747
    %1749 = vadd.xlane.f32.xlu0 %v1718
    %v1750 = vpop.xlane.xlu0 %1749
    %v1767 = vlaneseq
    %v1768 = vshrl.u32 %v1767, 7
    %v1769 = vsub.s32 %v586, %v1768
    %v1770 = vrot.slane %v1720, %v1769
    %v1771 = vlaneseq
    %v1772 = vshrl.u32 %v1771, 7
    %v1773 = vsub.s32 %v1194, %v1772
    %v1774 = vrot.slane %v1722, %v1773
    %v1775 = vsel %vm1199, %v1774, %v1770
    %v1776 = vlaneseq
    %v1777 = vshrl.u32 %v1776, 7
    %v1778 = vsub.s32 %v586, %v1777
    %v1779 = vrot.slane %v1724, %v1778
    %v1780 = vlaneseq
    %v1781 = vshrl.u32 %v1780, 7
    %v1782 = vsub.s32 %v1194, %v1781
    %v1783 = vrot.slane %v1726, %v1782
    %v1784 = vsel %vm1199, %v1783, %v1779
    %v1785 = vlaneseq
    %v1786 = vshrl.u32 %v1785, 7
    %v1787 = vsub.s32 %v586, %v1786
    %v1788 = vrot.slane %v1728, %v1787
    %v1789 = vlaneseq
    %v1790 = vshrl.u32 %v1789, 7
    %v1791 = vsub.s32 %v1194, %v1790
    %v1792 = vrot.slane %v1730, %v1791
    %v1793 = vsel %vm1199, %v1792, %v1788
    %v1794 = vlaneseq
    %v1795 = vshrl.u32 %v1794, 7
    %v1796 = vsub.s32 %v586, %v1795
    %v1797 = vrot.slane %v1732, %v1796
    %v1798 = vlaneseq
    %v1799 = vshrl.u32 %v1798, 7
    %v1800 = vsub.s32 %v1194, %v1799
    %v1801 = vrot.slane %v1734, %v1800
    %v1802 = vsel %vm1199, %v1801, %v1797
    %v1803 = vlaneseq
    %v1804 = vshrl.u32 %v1803, 7
    %v1805 = vsub.s32 %v586, %v1804
    %v1806 = vrot.slane %v1736, %v1805
    %v1807 = vlaneseq
    %v1808 = vshrl.u32 %v1807, 7
    %v1809 = vsub.s32 %v1194, %v1808
    %v1810 = vrot.slane %v1738, %v1809
    %v1811 = vsel %vm1199, %v1810, %v1806
    %v1812 = vlaneseq
    %v1813 = vshrl.u32 %v1812, 7
    %v1814 = vsub.s32 %v586, %v1813
    %v1815 = vrot.slane %v1740, %v1814
    %v1816 = vlaneseq
    %v1817 = vshrl.u32 %v1816, 7
    %v1818 = vsub.s32 %v1194, %v1817
    %v1819 = vrot.slane %v1742, %v1818
    %v1820 = vsel %vm1199, %v1819, %v1815
    %v1821 = vlaneseq
    %v1822 = vshrl.u32 %v1821, 7
    %v1823 = vsub.s32 %v586, %v1822
    %v1824 = vrot.slane %v1744, %v1823
    %v1825 = vlaneseq
    %v1826 = vshrl.u32 %v1825, 7
    %v1827 = vsub.s32 %v1194, %v1826
    %v1828 = vrot.slane %v1746, %v1827
    %v1829 = vsel %vm1199, %v1828, %v1824
    %v1830 = vlaneseq
    %v1831 = vshrl.u32 %v1830, 7
    %v1832 = vsub.s32 %v586, %v1831
    %v1833 = vrot.slane %v1748, %v1832
    %v1834 = vlaneseq
    %v1835 = vshrl.u32 %v1834, 7
    %v1836 = vsub.s32 %v1194, %v1835
    %v1837 = vrot.slane %v1750, %v1836
    %v1838 = vsel %vm1199, %v1837, %v1833
    %v1839 = vsel %vm651, %v1784, %v1775
    %v1840 = vsel %vm653, %v1793, %v1839
    %v1841 = vsel %vm655, %v1802, %v1840
    %v1842 = vsel %vm657, %v1811, %v1841
    %v1843 = vsel %vm659, %v1820, %v1842
    %v1844 = vsel %vm661, %v1829, %v1843
    %v1845 = vsel %vm663, %v1838, %v1844
    %v1847 = vsel %vm1173, %v1845, -1e+30
    %v1848 = vsel %vm1273, %v1847, -inf
    %1849 = vmax.xlane.f32.xlu0 %v1848
    %v1850 = vpop.xlane.xlu0 %1849
    %v1851 = vsub.f32 %v1847, %v1850
    %v1852 = vmul.f32 %v1851, 1.442695
    %v1853 = vpow.pop %v1852
    %v1854 = vsel %vm1273, %v1853, 0.0
    %1855 = vadd.xlane.f32.xlu0 %v1854
    %v1856 = vpop.xlane.xlu0 %1855
    %v1857 = vrcp.pop %v1856
    %v1858 = vmul.f32 %v1853, %v1857
    %v1860 = vsel %vm1273, %v1858, 0
    %1862 = vmatprep.subr.mxu0 0.0
    %1863 = vmatpush1.msra.mxu0 %v1463
    %1864 = vmatprep.subr.mxu0 0.0
    %1865 = vmatpush1.msra.mxu0 %v1468
    %1866 = vmatprep.subr.mxu0 0.0
    %1867 = vmatpush1.msra.mxu0 0.0
    %1868 = vmatprep.subr.mxu0 0.0
    %1869 = vmatpush1.msra.mxu0 0.0
    %1870 = vmatprep.subr.mxu0 0.0
    %1871 = vmatpush1.msra.mxu0 0.0
    %1872 = vmatprep.subr.mxu0 0.0
    %1873 = vmatpush1.msra.mxu0 0.0
    %1874 = vmatprep.subr.mxu0 0.0
    %1875 = vmatpush1.msra.mxu0 0.0
    %1876 = vmatprep.subr.mxu0 0.0
    %1877 = vmatpush1.msra.mxu0 0.0
    %1878 = vmatprep.subr.mxu0 0.0
    %1879 = vmatpush1.msra.mxu0 0.0
    %1880 = vmatprep.subr.mxu0 0.0
    %1881 = vmatpush1.msra.mxu0 0.0
    %1882 = vmatprep.subr.mxu0 0.0
    %1883 = vmatpush1.msra.mxu0 0.0
    %1884 = vmatprep.subr.mxu0 0.0
    %1885 = vmatpush1.msra.mxu0 0.0
    %1886 = vmatprep.subr.mxu0 0.0
    %1887 = vmatpush1.msra.mxu0 0.0
    %1888 = vmatprep.subr.mxu0 0.0
    %1889 = vmatpush1.msra.mxu0 0.0
    %1890 = vmatprep.subr.mxu0 0.0
    %1891 = vmatpush1.msra.mxu0 0.0
    %1892 = vmatprep.subr.mxu0 0.0
    %1893 = vmatpush1.msra.mxu0 0.0
    %1894 = vmatprep.subr.mxu0 0.0
    %1895 = vmatpush1.msra.mxu0 0.0
    %1896 = vmatprep.subr.mxu0 0.0
    %1897 = vmatpush1.msra.mxu0 0.0
    %1898 = vmatprep.subr.mxu0 0.0
    %1899 = vmatpush1.msra.mxu0 0.0
    %1900 = vmatprep.subr.mxu0 0.0
    %1901 = vmatpush1.msra.mxu0 0.0
    %1902 = vmatprep.subr.mxu0 0.0
    %1903 = vmatpush1.msra.mxu0 0.0
    %1904 = vmatprep.subr.mxu0 0.0
    %1905 = vmatpush1.msra.mxu0 0.0
    %1906 = vmatprep.subr.mxu0 0.0
    %1907 = vmatpush1.msra.mxu0 0.0
    %1908 = vmatprep.subr.mxu0 0.0
    %1909 = vmatpush1.msra.mxu0 0.0
    %1910 = vmatprep.subr.mxu0 0.0
    %1911 = vmatpush1.msra.mxu0 0.0
    %1912 = vmatprep.subr.mxu0 0.0
    %1913 = vmatpush1.msra.mxu0 0.0
    %1914 = vmatprep.subr.mxu0 0.0
    %1915 = vmatpush1.msra.mxu0 0.0
    %1916 = vmatprep.subr.mxu0 0.0
    %1917 = vmatpush1.msra.mxu0 0.0
    %1918 = vmatprep.subr.mxu0 0.0
    %1919 = vmatpush1.msra.mxu0 0.0
    %1920 = vmatprep.subr.mxu0 0.0
    %1921 = vmatpush1.msra.mxu0 0.0
    %1922 = vmatprep.subr.mxu0 0.0
    %1923 = vmatpush1.msra.mxu0 0.0
    %1924 = vmatprep.subr.mxu0 0.0
    %1925 = vmatpush1.msra.mxu0 0.0
    %1926 = vmatprep.mubr.f32.mxu0 0.0
    %1927 = vmatmul.mubr.f32.gmra.mrb[0].mxu0 %v1860
    %v1928 = vpop.f32.mrb[0].mxu0
    %v1929 = vadd.f32 0.0, %v1928
    %v1930 = vpop.f32.mrb[0].mxu0
    %1931 = vdwg.mxu0
    %s1932 = scalar_lea.vmem [#allocation8], 768
    %v1933 = vld [vmem:[%s1932] sm:$0xff]
    %v1934 = vld [vmem:[%s1932 + $0x8] sm:$0xff]
    %v1935 = vld [vmem:[%s1932 + $0x10] sm:$0xff]
    %v1936 = vld [vmem:[%s1932 + $0x18] sm:$0xff]
    %v1937 = vld [vmem:[%s1932 + $0x20] sm:$0xff]
    %v1938 = vld [vmem:[%s1932 + $0x28] sm:$0xff]
    %v1939 = vld [vmem:[%s1932 + $0x30] sm:$0xff]
    %v1940 = vld [vmem:[%s1932 + $0x38] sm:$0xff]
    %v1941 = vld [vmem:[%s1932 + $0x40] sm:$0xff]
    %v1942 = vld [vmem:[%s1932 + $0x48] sm:$0xff]
    %v1943 = vld [vmem:[%s1932 + $0x50] sm:$0xff]
    %v1944 = vld [vmem:[%s1932 + $0x58] sm:$0xff]
    %v1945 = vld [vmem:[%s1932 + $0x60] sm:$0xff]
    %v1946 = vld [vmem:[%s1932 + $0x68] sm:$0xff]
    %v1947 = vld [vmem:[%s1932 + $0x70] sm:$0xff]
    %v1948 = vld [vmem:[%s1932 + $0x78] sm:$0xff]
    %s1949 = scalar_lea.vmem [#allocation8], 896
    %v1950 = vld [vmem:[%s1949] sm:$0xff]
    %v1951 = vld [vmem:[%s1949 + $0x8] sm:$0xff]
    %v1952 = vld [vmem:[%s1949 + $0x10] sm:$0xff]
    %v1953 = vld [vmem:[%s1949 + $0x18] sm:$0xff]
    %v1954 = vld [vmem:[%s1949 + $0x20] sm:$0xff]
    %v1955 = vld [vmem:[%s1949 + $0x28] sm:$0xff]
    %v1956 = vld [vmem:[%s1949 + $0x30] sm:$0xff]
    %v1957 = vld [vmem:[%s1949 + $0x38] sm:$0xff]
    %v1958 = vld [vmem:[%s1949 + $0x40] sm:$0xff]
    %v1959 = vld [vmem:[%s1949 + $0x48] sm:$0xff]
    %v1960 = vld [vmem:[%s1949 + $0x50] sm:$0xff]
    %v1961 = vld [vmem:[%s1949 + $0x58] sm:$0xff]
    %v1962 = vld [vmem:[%s1949 + $0x60] sm:$0xff]
    %v1963 = vld [vmem:[%s1949 + $0x68] sm:$0xff]
    %v1964 = vld [vmem:[%s1949 + $0x70] sm:$0xff]
    %v1965 = vld [vmem:[%s1949 + $0x78] sm:$0xff]
    %v1966 = vlaneseq
    %v1967 = vshrl.u32 %v1966, 7
    %v1968 = vsub.s32 1, %v1967
    %v1969 = vrot.slane %v80, %v1968
    %1970 = vmatprep.subr.mxu0 0.0
    %1971 = vmatpush1.msra.mxu0 %v1933
    %1972 = vmatprep.subr.mxu0 0.0
    %1973 = vmatpush1.msra.mxu0 %v1934
    %1974 = vmatprep.subr.mxu0 0.0
    %1975 = vmatpush1.msra.mxu0 %v1935
    %1976 = vmatprep.subr.mxu0 0.0
    %1977 = vmatpush1.msra.mxu0 %v1936
    %1978 = vmatprep.subr.mxu0 0.0
    %1979 = vmatpush1.msra.mxu0 %v1937
    %1980 = vmatprep.subr.mxu0 0.0
    %1981 = vmatpush1.msra.mxu0 %v1938
    %1982 = vmatprep.subr.mxu0 0.0
    %1983 = vmatpush1.msra.mxu0 %v1939
    %1984 = vmatprep.subr.mxu0 0.0
    %1985 = vmatpush1.msra.mxu0 %v1940
    %1986 = vmatprep.subr.mxu0 0.0
    %1987 = vmatpush1.msra.mxu0 %v1941
    %1988 = vmatprep.subr.mxu0 0.0
    %1989 = vmatpush1.msra.mxu0 %v1942
    %1990 = vmatprep.subr.mxu0 0.0
    %1991 = vmatpush1.msra.mxu0 %v1943
    %1992 = vmatprep.subr.mxu0 0.0
    %1993 = vmatpush1.msra.mxu0 %v1944
    %1994 = vmatprep.subr.mxu0 0.0
    %1995 = vmatpush1.msra.mxu0 %v1945
    %1996 = vmatprep.subr.mxu0 0.0
    %1997 = vmatpush1.msra.mxu0 %v1946
    %1998 = vmatprep.subr.mxu0 0.0
    %1999 = vmatpush1.msra.mxu0 %v1947
    %2000 = vmatprep.subr.mxu0 0.0
    %2001 = vmatpush1.msra.mxu0 %v1948
    %2002 = vmatprep.subr.mxu0 0.0
    %2003 = vmatpush1.msra.mxu0 0.0
    %2004 = vmatprep.subr.mxu0 0.0
    %2005 = vmatpush1.msra.mxu0 0.0
    %2006 = vmatprep.subr.mxu0 0.0
    %2007 = vmatpush1.msra.mxu0 0.0
    %2008 = vmatprep.subr.mxu0 0.0
    %2009 = vmatpush1.msra.mxu0 0.0
    %2010 = vmatprep.subr.mxu0 0.0
    %2011 = vmatpush1.msra.mxu0 0.0
    %2012 = vmatprep.subr.mxu0 0.0
    %2013 = vmatpush1.msra.mxu0 0.0
    %2014 = vmatprep.subr.mxu0 0.0
    %2015 = vmatpush1.msra.mxu0 0.0
    %2016 = vmatprep.subr.mxu0 0.0
    %2017 = vmatpush1.msra.mxu0 0.0
    %2018 = vmatprep.subr.mxu0 0.0
    %2019 = vmatpush1.msra.mxu0 0.0
    %2020 = vmatprep.subr.mxu0 0.0
    %2021 = vmatpush1.msra.mxu0 0.0
    %2022 = vmatprep.subr.mxu0 0.0
    %2023 = vmatpush1.msra.mxu0 0.0
    %2024 = vmatprep.subr.mxu0 0.0
    %2025 = vmatpush1.msra.mxu0 0.0
    %2026 = vmatprep.subr.mxu0 0.0
    %2027 = vmatpush1.msra.mxu0 0.0
    %2028 = vmatprep.subr.mxu0 0.0
    %2029 = vmatpush1.msra.mxu0 0.0
    %2030 = vmatprep.subr.mxu0 0.0
    %2031 = vmatpush1.msra.mxu0 0.0
    %2032 = vmatprep.subr.mxu0 0.0
    %2033 = vmatpush1.msra.mxu0 0.0
    %2034 = vmatprep.mubr.f32.mxu0 0.0
    %2035 = vmatmul.mubr.f32.gmra.mrb[0].mxu0 %v1355
    %v2036 = vpop.f32.mrb[0].mxu0
    %v2037 = vadd.f32 %v1969, %v2036
    %v2038 = vpop.f32.mrb[0].mxu0
    %2039 = vdwg.mxu0
    %v2040 = vlaneseq
    %v2041 = vshrl.u32 %v2040, 7
    %v2042 = vsub.s32 2, %v2041
    %v2043 = vrot.slane %v80, %v2042
    %2044 = vmatprep.subr.mxu0 0.0
    %2045 = vmatpush1.msra.mxu0 %v1950
    %2046 = vmatprep.subr.mxu0 0.0
    %2047 = vmatpush1.msra.mxu0 %v1951
    %2048 = vmatprep.subr.mxu0 0.0
    %2049 = vmatpush1.msra.mxu0 %v1952
    %2050 = vmatprep.subr.mxu0 0.0
    %2051 = vmatpush1.msra.mxu0 %v1953
    %2052 = vmatprep.subr.mxu0 0.0
    %2053 = vmatpush1.msra.mxu0 %v1954
    %2054 = vmatprep.subr.mxu0 0.0
    %2055 = vmatpush1.msra.mxu0 %v1955
    %2056 = vmatprep.subr.mxu0 0.0
    %2057 = vmatpush1.msra.mxu0 %v1956
    %2058 = vmatprep.subr.mxu0 0.0
    %2059 = vmatpush1.msra.mxu0 %v1957
    %2060 = vmatprep.subr.mxu0 0.0
    %2061 = vmatpush1.msra.mxu0 %v1958
    %2062 = vmatprep.subr.mxu0 0.0
    %2063 = vmatpush1.msra.mxu0 %v1959
    %2064 = vmatprep.subr.mxu0 0.0
    %2065 = vmatpush1.msra.mxu0 %v1960
    %2066 = vmatprep.subr.mxu0 0.0
    %2067 = vmatpush1.msra.mxu0 %v1961
    %2068 = vmatprep.subr.mxu0 0.0
    %2069 = vmatpush1.msra.mxu0 %v1962
    %2070 = vmatprep.subr.mxu0 0.0
    %2071 = vmatpush1.msra.mxu0 %v1963
    %2072 = vmatprep.subr.mxu0 0.0
    %2073 = vmatpush1.msra.mxu0 %v1964
    %2074 = vmatprep.subr.mxu0 0.0
    %2075 = vmatpush1.msra.mxu0 %v1965
    %2076 = vmatprep.subr.mxu0 0.0
    %2077 = vmatpush1.msra.mxu0 0.0
    %2078 = vmatprep.subr.mxu0 0.0
    %2079 = vmatpush1.msra.mxu0 0.0
    %2080 = vmatprep.subr.mxu0 0.0
    %2081 = vmatpush1.msra.mxu0 0.0
    %2082 = vmatprep.subr.mxu0 0.0
    %2083 = vmatpush1.msra.mxu0 0.0
    %2084 = vmatprep.subr.mxu0 0.0
    %2085 = vmatpush1.msra.mxu0 0.0
    %2086 = vmatprep.subr.mxu0 0.0
    %2087 = vmatpush1.msra.mxu0 0.0
    %2088 = vmatprep.subr.mxu0 0.0
    %2089 = vmatpush1.msra.mxu0 0.0
    %2090 = vmatprep.subr.mxu0 0.0
    %2091 = vmatpush1.msra.mxu0 0.0
    %2092 = vmatprep.subr.mxu0 0.0
    %2093 = vmatpush1.msra.mxu0 0.0
    %2094 = vmatprep.subr.mxu0 0.0
    %2095 = vmatpush1.msra.mxu0 0.0
    %2096 = vmatprep.subr.mxu0 0.0
    %2097 = vmatpush1.msra.mxu0 0.0
    %2098 = vmatprep.subr.mxu0 0.0
    %2099 = vmatpush1.msra.mxu0 0.0
    %2100 = vmatprep.subr.mxu0 0.0
    %2101 = vmatpush1.msra.mxu0 0.0
    %2102 = vmatprep.subr.mxu0 0.0
    %2103 = vmatpush1.msra.mxu0 0.0
    %2104 = vmatprep.subr.mxu0 0.0
    %2105 = vmatpush1.msra.mxu0 0.0
    %2106 = vmatprep.subr.mxu0 0.0
    %2107 = vmatpush1.msra.mxu0 0.0
    %2108 = vmatprep.mubr.f32.mxu0 0.0
    %2109 = vmatmul.mubr.f32.gmra.mrb[0].mxu0 %v76
    %v2110 = vpop.f32.mrb[0].mxu0
    %v2111 = vadd.f32 %v2043, %v2110
    %v2112 = vpop.f32.mrb[0].mxu0
    %2113 = vdwg.mxu0
    %v2115 = vcombine.high %v2111, %v2111
    %v2117 = vunpack.c.l.s4 1966171168
    %v2118 = vunpack.c.0.s8 %v2117
    %v2119 = vlaneseq
    %v2120 = vshrl.u32 %v2119, 7
    %v2121 = vsub.s32 %v2118, %v2120
    %v2122 = vrot.slane %v2111, %v2121
    %v2124 = vunpack.c.l.s4 1966171168
    %v2125 = vunpack.c.0.s8 %v2124
    %v2126 = vlaneseq
    %v2127 = vshrl.u32 %v2126, 7
    %v2128 = vsub.s32 %v2125, %v2127
    %v2129 = vrot.slane %v2115, %v2128
    %v2130 = vcombine.high %v2122, %v2122
    %v2131 = vcombine.high %v2129, %v2129
    %v2133 = vunpack.c.l.s4 1966171168
    %v2134 = vunpack.c.0.s8 %v2133
    %v2135 = vlaneseq
    %v2136 = vshrl.u32 %v2135, 7
    %v2137 = vsub.s32 %v2134, %v2136
    %v2138 = vrot.slane %v2122, %v2137
    %v2140 = vunpack.c.l.s4 1966171168
    %v2141 = vunpack.c.0.s8 %v2140
    %v2142 = vlaneseq
    %v2143 = vshrl.u32 %v2142, 7
    %v2144 = vsub.s32 %v2141, %v2143
    %v2145 = vrot.slane %v2129, %v2144
    %v2147 = vunpack.c.l.s4 1966171168
    %v2148 = vunpack.c.0.s8 %v2147
    %v2149 = vlaneseq
    %v2150 = vshrl.u32 %v2149, 7
    %v2151 = vsub.s32 %v2148, %v2150
    %v2152 = vrot.slane %v2130, %v2151
    %v2154 = vunpack.c.l.s4 1966171168
    %v2155 = vunpack.c.0.s8 %v2154
    %v2156 = vlaneseq
    %v2157 = vshrl.u32 %v2156, 7
    %v2158 = vsub.s32 %v2155, %v2157
    %v2159 = vrot.slane %v2131, %v2158
    %v2160 = vcombine.high %v2138, %v2138
    %v2161 = vcombine.high %v2145, %v2145
    %v2162 = vcombine.high %v2152, %v2152
    %v2163 = vcombine.high %v2159, %v2159
    %v2164 = vlaneseq
    %v2165 = vshrl.u32 %v2164, 7
    %v2166 = vsub.s32 0, %v2165
    %v2167 = vrot.slane %v2138, %v2166
    %v2168 = vlaneseq
    %v2169 = vshrl.u32 %v2168, 7
    %v2170 = vsub.s32 0, %v2169
    %v2171 = vrot.slane %v2152, %v2170
    %v2172 = vlaneseq
    %v2173 = vshrl.u32 %v2172, 7
    %v2174 = vsub.s32 0, %v2173
    %v2175 = vrot.slane %v2160, %v2174
    %v2176 = vlaneseq
    %v2177 = vshrl.u32 %v2176, 7
    %v2178 = vsub.s32 0, %v2177
    %v2179 = vrot.slane %v2162, %v2178
    %v2180 = vlaneseq
    %v2181 = vshrl.u32 %v2180, 7
    %v2182 = vsub.s32 0, %v2181
    %v2183 = vrot.slane %v2145, %v2182
    %v2184 = vlaneseq
    %v2185 = vshrl.u32 %v2184, 7
    %v2186 = vsub.s32 0, %v2185
    %v2187 = vrot.slane %v2159, %v2186
    %v2188 = vlaneseq
    %v2189 = vshrl.u32 %v2188, 7
    %v2190 = vsub.s32 0, %v2189
    %v2191 = vrot.slane %v2161, %v2190
    %v2192 = vlaneseq
    %v2193 = vshrl.u32 %v2192, 7
    %v2194 = vsub.s32 0, %v2193
    %v2195 = vrot.slane %v2163, %v2194
    %v2204 = vadd.f32 %v2037, %v2167
    %v2205 = vadd.f32 %v2037, %v2171
    %v2206 = vadd.f32 %v2037, %v2175
    %v2207 = vadd.f32 %v2037, %v2179
    %v2208 = vadd.f32 %v2037, %v2183
    %v2209 = vadd.f32 %v2037, %v2187
    %v2210 = vadd.f32 %v2037, %v2191
    %v2211 = vadd.f32 %v2037, %v2195
    %vm2212 = vcmp.ge.f32.partialorder %v2204, 0.0
    %vm2213 = vcmp.ge.f32.partialorder %v2205, 0.0
    %vm2214 = vcmp.ge.f32.partialorder %v2206, 0.0
    %vm2215 = vcmp.ge.f32.partialorder %v2207, 0.0
    %vm2216 = vcmp.ge.f32.partialorder %v2208, 0.0
    %vm2217 = vcmp.ge.f32.partialorder %v2209, 0.0
    %vm2218 = vcmp.ge.f32.partialorder %v2210, 0.0
    %vm2219 = vcmp.ge.f32.partialorder %v2211, 0.0
    %v2220 = vmul.f32 %v2204, 0.2
    %v2221 = vmul.f32 %v2205, 0.2
    %v2222 = vmul.f32 %v2206, 0.2
    %v2223 = vmul.f32 %v2207, 0.2
    %v2224 = vmul.f32 %v2208, 0.2
    %v2225 = vmul.f32 %v2209, 0.2
    %v2226 = vmul.f32 %v2210, 0.2
    %v2227 = vmul.f32 %v2211, 0.2
    %v2228 = vsel %vm2212, %v2204, %v2220
    %v2229 = vsel %vm2213, %v2205, %v2221
    %v2230 = vsel %vm2214, %v2206, %v2222
    %v2231 = vsel %vm2215, %v2207, %v2223
    %v2232 = vsel %vm2216, %v2208, %v2224
    %v2233 = vsel %vm2217, %v2209, %v2225
    %v2234 = vsel %vm2218, %v2210, %v2226
    %v2235 = vsel %vm2219, %v2211, %v2227
    %v2236 = vlaneseq
    %v2237 = vshrl.u32 %v2236, 7
    %v2238 = vsub.s32 3, %v2237
    %v2239 = vrot.slane %v80, %v2238
    %v2240 = vmul.f32 %v2228, %v2239
    %v2241 = vmul.f32 %v2229, %v2239
    %v2242 = vmul.f32 %v2230, %v2239
    %v2243 = vmul.f32 %v2231, %v2239
    %v2244 = vmul.f32 %v2232, %v2239
    %v2245 = vmul.f32 %v2233, %v2239
    %v2246 = vmul.f32 %v2234, %v2239
    %v2247 = vmul.f32 %v2235, %v2239
    %2248 = vadd.xlane.f32.xlu0 %v2240
    %v2249 = vpop.xlane.xlu0 %2248
    %2250 = vadd.xlane.f32.xlu0 %v2241
    %v2251 = vpop.xlane.xlu0 %2250
    %2252 = vadd.xlane.f32.xlu0 %v2242
    %v2253 = vpop.xlane.xlu0 %2252
    %2254 = vadd.xlane.f32.xlu0 %v2243
    %v2255 = vpop.xlane.xlu0 %2254
    %2256 = vadd.xlane.f32.xlu0 %v2244
    %v2257 = vpop.xlane.xlu0 %2256
    %2258 = vadd.xlane.f32.xlu0 %v2245
    %v2259 = vpop.xlane.xlu0 %2258
    %2260 = vadd.xlane.f32.xlu0 %v2246
    %v2261 = vpop.xlane.xlu0 %2260
    %2262 = vadd.xlane.f32.xlu0 %v2247
    %v2263 = vpop.xlane.xlu0 %2262
    %vm2264 = vcmp.gt.f32.partialorder %v84, 0.5
    %v2273 = vlaneseq
    %v2274 = vshrl.u32 %v2273, 7
    %v2275 = vsub.s32 %v586, %v2274
    %v2276 = vrot.slane %v2249, %v2275
    %v2277 = vlaneseq
    %v2278 = vshrl.u32 %v2277, 7
    %v2279 = vsub.s32 %v586, %v2278
    %v2280 = vrot.slane %v2251, %v2279
    %v2281 = vlaneseq
    %v2282 = vshrl.u32 %v2281, 7
    %v2283 = vsub.s32 %v586, %v2282
    %v2284 = vrot.slane %v2253, %v2283
    %v2285 = vlaneseq
    %v2286 = vshrl.u32 %v2285, 7
    %v2287 = vsub.s32 %v586, %v2286
    %v2288 = vrot.slane %v2255, %v2287
    %v2289 = vlaneseq
    %v2290 = vshrl.u32 %v2289, 7
    %v2291 = vsub.s32 %v586, %v2290
    %v2292 = vrot.slane %v2257, %v2291
    %v2293 = vlaneseq
    %v2294 = vshrl.u32 %v2293, 7
    %v2295 = vsub.s32 %v586, %v2294
    %v2296 = vrot.slane %v2259, %v2295
    %v2297 = vlaneseq
    %v2298 = vshrl.u32 %v2297, 7
    %v2299 = vsub.s32 %v586, %v2298
    %v2300 = vrot.slane %v2261, %v2299
    %v2301 = vlaneseq
    %v2302 = vshrl.u32 %v2301, 7
    %v2303 = vsub.s32 %v586, %v2302
    %v2304 = vrot.slane %v2263, %v2303
    %v2305 = vsel %vm651, %v2280, %v2276
    %v2306 = vsel %vm653, %v2284, %v2305
    %v2307 = vsel %vm655, %v2288, %v2306
    %v2308 = vsel %vm657, %v2292, %v2307
    %v2309 = vsel %vm659, %v2296, %v2308
    %v2310 = vsel %vm661, %v2300, %v2309
    %v2311 = vsel %vm663, %v2304, %v2310
    %v2313 = vsel %vm2264, %v2311, -1e+30
    %v2314 = vsel %vm676, %v2313, -inf
    %2315 = vmax.xlane.f32.xlu0 %v2314
    %v2316 = vpop.xlane.xlu0 %2315
    %v2317 = vsub.f32 %v2313, %v2316
    %v2318 = vmul.f32 %v2317, 1.442695
    %v2319 = vpow.pop %v2318
    %v2320 = vsel %vm676, %v2319, 0.0
    %2321 = vadd.xlane.f32.xlu0 %v2320
    %v2322 = vpop.xlane.xlu0 %2321
    %v2323 = vrcp.pop %v2322
    %v2324 = vmul.f32 %v2319, %v2323
    %v2326 = vsel %vm676, %v2324, 0
    %2328 = vmatprep.subr.mxu0 0.0
    %2329 = vmatpush1.msra.mxu0 %v2037
    %2330 = vmatprep.subr.mxu0 0.0
    %2331 = vmatpush1.msra.mxu0 0.0
    %2332 = vmatprep.subr.mxu0 0.0
    %2333 = vmatpush1.msra.mxu0 0.0
    %2334 = vmatprep.subr.mxu0 0.0
    %2335 = vmatpush1.msra.mxu0 0.0
    %2336 = vmatprep.subr.mxu0 0.0
    %2337 = vmatpush1.msra.mxu0 0.0
    %2338 = vmatprep.subr.mxu0 0.0
    %2339 = vmatpush1.msra.mxu0 0.0
    %2340 = vmatprep.subr.mxu0 0.0
    %2341 = vmatpush1.msra.mxu0 0.0
    %2342 = vmatprep.subr.mxu0 0.0
    %2343 = vmatpush1.msra.mxu0 0.0
    %2344 = vmatprep.subr.mxu0 0.0
    %2345 = vmatpush1.msra.mxu0 0.0
    %2346 = vmatprep.subr.mxu0 0.0
    %2347 = vmatpush1.msra.mxu0 0.0
    %2348 = vmatprep.subr.mxu0 0.0
    %2349 = vmatpush1.msra.mxu0 0.0
    %2350 = vmatprep.subr.mxu0 0.0
    %2351 = vmatpush1.msra.mxu0 0.0
    %2352 = vmatprep.subr.mxu0 0.0
    %2353 = vmatpush1.msra.mxu0 0.0
    %2354 = vmatprep.subr.mxu0 0.0
    %2355 = vmatpush1.msra.mxu0 0.0
    %2356 = vmatprep.subr.mxu0 0.0
    %2357 = vmatpush1.msra.mxu0 0.0
    %2358 = vmatprep.subr.mxu0 0.0
    %2359 = vmatpush1.msra.mxu0 0.0
    %2360 = vmatprep.subr.mxu0 0.0
    %2361 = vmatpush1.msra.mxu0 0.0
    %2362 = vmatprep.subr.mxu0 0.0
    %2363 = vmatpush1.msra.mxu0 0.0
    %2364 = vmatprep.subr.mxu0 0.0
    %2365 = vmatpush1.msra.mxu0 0.0
    %2366 = vmatprep.subr.mxu0 0.0
    %2367 = vmatpush1.msra.mxu0 0.0
    %2368 = vmatprep.subr.mxu0 0.0
    %2369 = vmatpush1.msra.mxu0 0.0
    %2370 = vmatprep.subr.mxu0 0.0
    %2371 = vmatpush1.msra.mxu0 0.0
    %2372 = vmatprep.subr.mxu0 0.0
    %2373 = vmatpush1.msra.mxu0 0.0
    %2374 = vmatprep.subr.mxu0 0.0
    %2375 = vmatpush1.msra.mxu0 0.0
    %2376 = vmatprep.subr.mxu0 0.0
    %2377 = vmatpush1.msra.mxu0 0.0
    %2378 = vmatprep.subr.mxu0 0.0
    %2379 = vmatpush1.msra.mxu0 0.0
    %2380 = vmatprep.subr.mxu0 0.0
    %2381 = vmatpush1.msra.mxu0 0.0
    %2382 = vmatprep.subr.mxu0 0.0
    %2383 = vmatpush1.msra.mxu0 0.0
    %2384 = vmatprep.subr.mxu0 0.0
    %2385 = vmatpush1.msra.mxu0 0.0
    %2386 = vmatprep.subr.mxu0 0.0
    %2387 = vmatpush1.msra.mxu0 0.0
    %2388 = vmatprep.subr.mxu0 0.0
    %2389 = vmatpush1.msra.mxu0 0.0
    %2390 = vmatprep.subr.mxu0 0.0
    %2391 = vmatpush1.msra.mxu0 0.0
    %2392 = vmatprep.mubr.f32.mxu0 0.0
    %2393 = vmatmul.mubr.f32.gmra.mrb[0].mxu0 %v2326
    %v2394 = vpop.f32.mrb[0].mxu0
    %v2395 = vadd.f32 0.0, %v2394
    %v2396 = vpop.f32.mrb[0].mxu0
    %2397 = vdwg.mxu0
    %s2398 = scalar_lea.vmem [#allocation8], 1024
    %v2399 = vld [vmem:[%s2398] sm:$0xff]
    %v2400 = vld [vmem:[%s2398 + $0x8] sm:$0xff]
    %v2401 = vld [vmem:[%s2398 + $0x10] sm:$0xff]
    %v2402 = vld [vmem:[%s2398 + $0x18] sm:$0xff]
    %v2403 = vld [vmem:[%s2398 + $0x20] sm:$0xff]
    %v2404 = vld [vmem:[%s2398 + $0x28] sm:$0xff]
    %v2405 = vld [vmem:[%s2398 + $0x30] sm:$0xff]
    %v2406 = vld [vmem:[%s2398 + $0x38] sm:$0xff]
    %v2407 = vld [vmem:[%s2398 + $0x40] sm:$0xff]
    %v2408 = vld [vmem:[%s2398 + $0x48] sm:$0xff]
    %v2409 = vld [vmem:[%s2398 + $0x50] sm:$0xff]
    %v2410 = vld [vmem:[%s2398 + $0x58] sm:$0xff]
    %v2411 = vld [vmem:[%s2398 + $0x60] sm:$0xff]
    %v2412 = vld [vmem:[%s2398 + $0x68] sm:$0xff]
    %v2413 = vld [vmem:[%s2398 + $0x70] sm:$0xff]
    %v2414 = vld [vmem:[%s2398 + $0x78] sm:$0xff]
    %s2415 = scalar_lea.vmem [#allocation8], 1152
    %v2416 = vld [vmem:[%s2415] sm:$0xff]
    %v2417 = vld [vmem:[%s2415 + $0x8] sm:$0xff]
    %v2418 = vld [vmem:[%s2415 + $0x10] sm:$0xff]
    %v2419 = vld [vmem:[%s2415 + $0x18] sm:$0xff]
    %v2420 = vld [vmem:[%s2415 + $0x20] sm:$0xff]
    %v2421 = vld [vmem:[%s2415 + $0x28] sm:$0xff]
    %v2422 = vld [vmem:[%s2415 + $0x30] sm:$0xff]
    %v2423 = vld [vmem:[%s2415 + $0x38] sm:$0xff]
    %v2424 = vld [vmem:[%s2415 + $0x40] sm:$0xff]
    %v2425 = vld [vmem:[%s2415 + $0x48] sm:$0xff]
    %v2426 = vld [vmem:[%s2415 + $0x50] sm:$0xff]
    %v2427 = vld [vmem:[%s2415 + $0x58] sm:$0xff]
    %v2428 = vld [vmem:[%s2415 + $0x60] sm:$0xff]
    %v2429 = vld [vmem:[%s2415 + $0x68] sm:$0xff]
    %v2430 = vld [vmem:[%s2415 + $0x70] sm:$0xff]
    %v2431 = vld [vmem:[%s2415 + $0x78] sm:$0xff]
    %2432 = vmatprep.subr.mxu0 0.0
    %2433 = vmatpush1.msra.mxu0 %v2416
    %2434 = vmatprep.subr.mxu0 0.0
    %2435 = vmatpush1.msra.mxu0 %v2417
    %2436 = vmatprep.subr.mxu0 0.0
    %2437 = vmatpush1.msra.mxu0 %v2418
    %2438 = vmatprep.subr.mxu0 0.0
    %2439 = vmatpush1.msra.mxu0 %v2419
    %2440 = vmatprep.subr.mxu0 0.0
    %2441 = vmatpush1.msra.mxu0 %v2420
    %2442 = vmatprep.subr.mxu0 0.0
    %2443 = vmatpush1.msra.mxu0 %v2421
    %2444 = vmatprep.subr.mxu0 0.0
    %2445 = vmatpush1.msra.mxu0 %v2422
    %2446 = vmatprep.subr.mxu0 0.0
    %2447 = vmatpush1.msra.mxu0 %v2423
    %2448 = vmatprep.subr.mxu0 0.0
    %2449 = vmatpush1.msra.mxu0 %v2424
    %2450 = vmatprep.subr.mxu0 0.0
    %2451 = vmatpush1.msra.mxu0 %v2425
    %2452 = vmatprep.subr.mxu0 0.0
    %2453 = vmatpush1.msra.mxu0 %v2426
    %2454 = vmatprep.subr.mxu0 0.0
    %2455 = vmatpush1.msra.mxu0 %v2427
    %2456 = vmatprep.subr.mxu0 0.0
    %2457 = vmatpush1.msra.mxu0 %v2428
    %2458 = vmatprep.subr.mxu0 0.0
    %2459 = vmatpush1.msra.mxu0 %v2429
    %2460 = vmatprep.subr.mxu0 0.0
    %2461 = vmatpush1.msra.mxu0 %v2430
    %2462 = vmatprep.subr.mxu0 0.0
    %2463 = vmatpush1.msra.mxu0 %v2431
    %2464 = vmatprep.subr.mxu0 0.0
    %2465 = vmatpush1.msra.mxu0 0.0
    %2466 = vmatprep.subr.mxu0 0.0
    %2467 = vmatpush1.msra.mxu0 0.0
    %2468 = vmatprep.subr.mxu0 0.0
    %2469 = vmatpush1.msra.mxu0 0.0
    %2470 = vmatprep.subr.mxu0 0.0
    %2471 = vmatpush1.msra.mxu0 0.0
    %2472 = vmatprep.subr.mxu0 0.0
    %2473 = vmatpush1.msra.mxu0 0.0
    %2474 = vmatprep.subr.mxu0 0.0
    %2475 = vmatpush1.msra.mxu0 0.0
    %2476 = vmatprep.subr.mxu0 0.0
    %2477 = vmatpush1.msra.mxu0 0.0
    %2478 = vmatprep.subr.mxu0 0.0
    %2479 = vmatpush1.msra.mxu0 0.0
    %2480 = vmatprep.subr.mxu0 0.0
    %2481 = vmatpush1.msra.mxu0 0.0
    %2482 = vmatprep.subr.mxu0 0.0
    %2483 = vmatpush1.msra.mxu0 0.0
    %2484 = vmatprep.subr.mxu0 0.0
    %2485 = vmatpush1.msra.mxu0 0.0
    %2486 = vmatprep.subr.mxu0 0.0
    %2487 = vmatpush1.msra.mxu0 0.0
    %2488 = vmatprep.subr.mxu0 0.0
    %2489 = vmatpush1.msra.mxu0 0.0
    %2490 = vmatprep.subr.mxu0 0.0
    %2491 = vmatpush1.msra.mxu0 0.0
    %2492 = vmatprep.subr.mxu0 0.0
    %2493 = vmatpush1.msra.mxu0 0.0
    %2494 = vmatprep.subr.mxu0 0.0
    %2495 = vmatpush1.msra.mxu0 0.0
    %2496 = vmatprep.mubr.f32.mxu0 0.0
    %2497 = vmatmul.mubr.f32.gmra.mrb[0].mxu0 %v2395
    %v2498 = vpop.f32.mrb[0].mxu0
    %v2499 = vadd.f32 0.0, %v2498
    %v2500 = vpop.f32.mrb[0].mxu0
    %2501 = vdwg.mxu0
    %2502 = vmatprep.subr.mxu0 0.0
    %2503 = vmatpush1.msra.mxu0 %v2399
    %2504 = vmatprep.subr.mxu0 0.0
    %2505 = vmatpush1.msra.mxu0 %v2400
    %2506 = vmatprep.subr.mxu0 0.0
    %2507 = vmatpush1.msra.mxu0 %v2401
    %2508 = vmatprep.subr.mxu0 0.0
    %2509 = vmatpush1.msra.mxu0 %v2402
    %2510 = vmatprep.subr.mxu0 0.0
    %2511 = vmatpush1.msra.mxu0 %v2403
    %2512 = vmatprep.subr.mxu0 0.0
    %2513 = vmatpush1.msra.mxu0 %v2404
    %2514 = vmatprep.subr.mxu0 0.0
    %2515 = vmatpush1.msra.mxu0 %v2405
    %2516 = vmatprep.subr.mxu0 0.0
    %2517 = vmatpush1.msra.mxu0 %v2406
    %2518 = vmatprep.subr.mxu0 0.0
    %2519 = vmatpush1.msra.mxu0 %v2407
    %2520 = vmatprep.subr.mxu0 0.0
    %2521 = vmatpush1.msra.mxu0 %v2408
    %2522 = vmatprep.subr.mxu0 0.0
    %2523 = vmatpush1.msra.mxu0 %v2409
    %2524 = vmatprep.subr.mxu0 0.0
    %2525 = vmatpush1.msra.mxu0 %v2410
    %2526 = vmatprep.subr.mxu0 0.0
    %2527 = vmatpush1.msra.mxu0 %v2411
    %2528 = vmatprep.subr.mxu0 0.0
    %2529 = vmatpush1.msra.mxu0 %v2412
    %2530 = vmatprep.subr.mxu0 0.0
    %2531 = vmatpush1.msra.mxu0 %v2413
    %2532 = vmatprep.subr.mxu0 0.0
    %2533 = vmatpush1.msra.mxu0 %v2414
    %2534 = vmatprep.subr.mxu0 0.0
    %2535 = vmatpush1.msra.mxu0 0.0
    %2536 = vmatprep.subr.mxu0 0.0
    %2537 = vmatpush1.msra.mxu0 0.0
    %2538 = vmatprep.subr.mxu0 0.0
    %2539 = vmatpush1.msra.mxu0 0.0
    %2540 = vmatprep.subr.mxu0 0.0
    %2541 = vmatpush1.msra.mxu0 0.0
    %2542 = vmatprep.subr.mxu0 0.0
    %2543 = vmatpush1.msra.mxu0 0.0
    %2544 = vmatprep.subr.mxu0 0.0
    %2545 = vmatpush1.msra.mxu0 0.0
    %2546 = vmatprep.subr.mxu0 0.0
    %2547 = vmatpush1.msra.mxu0 0.0
    %2548 = vmatprep.subr.mxu0 0.0
    %2549 = vmatpush1.msra.mxu0 0.0
    %2550 = vmatprep.subr.mxu0 0.0
    %2551 = vmatpush1.msra.mxu0 0.0
    %2552 = vmatprep.subr.mxu0 0.0
    %2553 = vmatpush1.msra.mxu0 0.0
    %2554 = vmatprep.subr.mxu0 0.0
    %2555 = vmatpush1.msra.mxu0 0.0
    %2556 = vmatprep.subr.mxu0 0.0
    %2557 = vmatpush1.msra.mxu0 0.0
    %2558 = vmatprep.subr.mxu0 0.0
    %2559 = vmatpush1.msra.mxu0 0.0
    %2560 = vmatprep.subr.mxu0 0.0
    %2561 = vmatpush1.msra.mxu0 0.0
    %2562 = vmatprep.subr.mxu0 0.0
    %2563 = vmatpush1.msra.mxu0 0.0
    %2564 = vmatprep.subr.mxu0 0.0
    %2565 = vmatpush1.msra.mxu0 0.0
    %2566 = vmatprep.mubr.f32.mxu0 0.0
    %2567 = vmatmul.mubr.f32.gmra.mrb[0].mxu0 %v1929
    %v2568 = vpop.f32.mrb[0].mxu0
    %v2569 = vadd.f32 %v2499, %v2568
    %v2570 = vpop.f32.mrb[0].mxu0
    %2571 = vdwg.mxu0
    %v2572 = vlaneseq
    %v2573 = vshrl.u32 %v2572, 7
    %v2574 = vsub.s32 4, %v2573
    %v2575 = vrot.slane %v80, %v2574
    %v2576 = vadd.f32 %v2569, %v2575
    %2577 = vst [vmem:[#allocation10] sm:$0xff] %v2576
    // Predicated region
    $region46: #{tpu_custom_call.1} parent=1 // pred_check
      _
    $region47: #{tpu_custom_call.1} parent=1 // pred_check_branch
      %2579 = sbr.rel (0) target = $region49
    $region48: #{tpu_custom_call.1} parent=1 // pred_region
      %s2581 = ssub.s32 128, 128
      %2582 = vsyncadd [#allocation4], %s2581
      %s2584 = sshll.u32 [#allocation10], 4
      %s2585 = int_to_ptr.vmem [resolvable:$true] %s2584
      %2587 = dma.vmem_to_hbm [thread:$0]  %s2585, 128, %s7, [#allocation4]
    $region49: #{tpu_custom_call.1} parent=1 // pred_fallthru
      _
    // Predicated region
    $region50: #{tpu_custom_call.1} parent=1 // pred_check
      _
    $region51: #{tpu_custom_call.1} parent=1 // pred_check_branch
      %2589 = sbr.rel (0) target = $region53
    $region52: #{tpu_custom_call.1} parent=1 // pred_region
      %2590 = dma.done [#allocation4], 128
    $region53: #{tpu_custom_call.1} parent=1 // pred_fallthru
      _
    %2591 = vsyncpa [#allocation3], 1
    %2592 = vsyncpa [#allocation6], 1
    %2593 = vsyncpa [#allocation9], 1
    %2594 = vsyncpa [#allocation4], 1

</llo_original>
